<compile_context>
chip_gen: v5e
topology: v5e:2x2
jax: 0.10.0
libtpu: 0.0.40
codegen_flags: <defaults>
</compile_context>

<pallas_src>
import functools

import jax
import jax.numpy as jnp
from jax import lax
from jax.experimental import pallas as pl
from jax.experimental.pallas import tpu as pltpu


def _lstm_reg_kernel(x_ref,      # (S*Bp, I)   all timesteps, flattened, batch-padded
                     wih1_ref,   # (I, 4H)
                     b1_ref,     # (1, 4H)
                     w2_ref,     # (4H, 8H)    fused wih2 | whh2 | whh1 (zero-padded rows)
                     b2_ref,     # (1, 4H)
                     wfc_ref,    # (4H, O)     real rows at [3H,4H), rest zero
                     bfc_ref,    # (1, O)
                     out_ref,    # (S*Bp, O)
                     buf_ref,    # VMEM scratch (S*Bp, 4H): xp, overwritten by h2
                     *, seq_len, batch_pad, hidden):
    S, B, H = seq_len, batch_pad, hidden
    G = 4 * H

    # ---- Prologue: layer-1 input projection for ALL timesteps (one matmul,
    # off the serial recurrence chain).
    buf_ref[...] = (jnp.dot(x_ref[...], wih1_ref[...],
                            preferred_element_type=jnp.float32)
                    + b1_ref[...])

    # ---- Loop invariants, hoisted once (JAX does not CSE broadcasts).
    b2 = jnp.broadcast_to(b2_ref[...], (B, G))
    lane = lax.broadcasted_iota(jnp.int32, (B, G), 1)
    tanh_lane = (lane >= 2 * H) & (lane < 3 * H)   # g-gate block (torch order i,f,g,o)
    f_lane = (lane >= H) & (lane < 2 * H)          # f-gate block

    def lstm_gates(g_pre, c_prev):
        """g_pre: (B, 4H) gate pre-activations (i|f|g|o blocks of H lanes).

        c_prev / c_new keep the cell state in the f block; h_new keeps the
        hidden state in the o block.  Other lanes carry bounded junk that the
        zero-padded weight rows discard exactly at the next matmul.
        All rolls are by half-width or act on duplicated data, so the result
        is independent of the roll direction convention.
        """
        # One EUP pass: sigmoid(x) = 0.5 * (1 + tanh(x / 2)).
        t = jnp.tanh(jnp.where(tanh_lane, g_pre, 0.5 * g_pre))
        act = jnp.where(tanh_lane, t, 0.5 * t + 0.5)
        # sigmoid(i)*tanh(g) lands identically in blocks 0 and 2.
        ig = act * pltpu.roll(act, 2 * H, axis=1)
        # c_new (f block) = sigmoid(f)*c + sigmoid(i)*tanh(g)
        c_new = act * c_prev + pltpu.roll(ig, H, axis=1)
        # h_new (o block) = sigmoid(o)*tanh(c_new)
        h_new = act * jnp.tanh(pltpu.roll(c_new, 2 * H, axis=1))
        return h_new, c_new

    zeros = jnp.zeros((B, G), jnp.float32)
    r1 = zeros                      # h1(t-1) @ whh1, produced by the fused matmul
    c1, h2, c2 = zeros, zeros, zeros

    # ---- Recurrence: fully unrolled (S small & static); one fused matmul/step.
    for t in range(S):
        lo = t * B
        g1 = buf_ref[lo:lo + B, :] + r1               # aligned (8,128) load
        h1, c1 = lstm_gates(g1, c1)
        # Combined layer-2 LHS: h1 valid in o block, h2 moved into f block.
        comb = jnp.where(f_lane, pltpu.roll(h2, 2 * H, axis=1), h1)
        big = jnp.dot(comb, w2_ref[...], preferred_element_type=jnp.float32)
        g2 = big[:, :G] + b2                          # layer-2 pre-activations
        r1 = big[:, G:]                               # next step's h1 @ whh1
        h2, c2 = lstm_gates(g2, c2)
        buf_ref[lo:lo + B, :] = h2                    # xp[t] dead -> reuse slot

    # ---- Epilogue: FC head over all timesteps at once; one bulk store.
    y = (jnp.dot(buf_ref[...], wfc_ref[...],
                 preferred_element_type=jnp.float32) + bfc_ref[...])
    out_ref[...] = y.astype(out_ref.dtype)


def prepare_params(params):
    """One-time (outside jit) conversion of torch-layout params to kernel layout."""
    H = params["whh1"].shape[0]
    G = 4 * H

    def pad_rows(w):  # (H, N) -> (4H, N) with real rows in the o block [3H, 4H)
        return jnp.concatenate(
            [jnp.zeros((3 * H,) + w.shape[1:], w.dtype), w], axis=0)

    # Fused layer-2 / layer-1-recurrent weight, shape (4H, 8H):
    #   cols [0,4H):  rows [3H,4H) = wih2, rows [H,2H) = whh2
    #   cols [4H,8H): rows [3H,4H) = whh1
    left = jnp.zeros((G, G), jnp.float32)
    left = left.at[H:2 * H, :].set(params["whh2"])
    left = left.at[3 * H:, :].set(params["wih2"])
    right = jnp.zeros((G, G), jnp.float32)
    right = right.at[3 * H:, :].set(params["whh1"])

    return {
        "wih1": params["wih1"],
        "b1": params["b1"],
        "w2": jnp.concatenate([left, right], axis=1),
        "b2": params["b2"],
        "wfc": pad_rows(params["wfc"]),
        "bfc": params["bfc"],
    }


def lstm_regression_forward(x, prepared):
    """x: (S, B, I) f32 -> (S, B, O) f32 (torch 2-layer LSTM + Linear head)."""
    S, B, I = x.shape
    G = prepared["w2"].shape[0]
    H = G // 4
    O = prepared["wfc"].shape[1]
    Bp = max(8, ((B + 7) // 8) * 8)     # pad batch to one sublane tile

    xp = jnp.zeros((S, Bp, I), x.dtype).at[:, :B, :].set(x)
    x2 = xp.reshape(S * Bp, I)

    kernel = functools.partial(_lstm_reg_kernel,
                               seq_len=S, batch_pad=Bp, hidden=H)
    y = pl.pallas_call(
        kernel,
        out_shape=jax.ShapeDtypeStruct((S * Bp, O), jnp.float32),
        scratch_shapes=[pltpu.VMEM((S * Bp, G), jnp.float32)],
    )(x2, prepared["wih1"], prepared["b1"], prepared["w2"], prepared["b2"],
      prepared["wfc"], prepared["bfc"])
    # TODO(synk): for very long sequences on v7x (64 MiB VMEM), stream x/out
    # via a time-chunk grid axis instead of one (S*Bp, 4H) resident buffer.
    return y.reshape(S, Bp, O)[:, :B, :]


def init_params(key, input_size, hidden_size, output_size):
    """Deterministic init, matching PyTorch shapes (stored pre-transposed)."""
    H = hidden_size
    ks = jax.random.split(key, 10)
    bound = 1.0 / jnp.sqrt(jnp.float32(H))
    u = lambda k, shp: jax.random.uniform(k, shp, jnp.float32, -bound, bound)

    # PyTorch: weight_ih_l0 (4H, I), weight_hh_l0 (4H, H), biases (4H,)
    w_ih1 = u(ks[0], (4 * H, input_size))
    w_hh1 = u(ks[1], (4 * H, H))
    b_ih1, b_hh1 = u(ks[2], (4 * H,)), u(ks[3], (4 * H,))
    w_ih2 = u(ks[4], (4 * H, H))
    w_hh2 = u(ks[5], (4 * H, H))
    b_ih2, b_hh2 = u(ks[6], (4 * H,)), u(ks[7], (4 * H,))
    # fc: weight (O, H), bias (O,)
    w_fc = u(ks[8], (output_size, H))
    b_fc = u(ks[9], (output_size,))

    return {
        "wih1": w_ih1.T, "whh1": w_hh1.T, "b1": (b_ih1 + b_hh1)[None, :],
        "wih2": w_ih2.T, "whh2": w_hh2.T, "b2": (b_ih2 + b_hh2)[None, :],
        "wfc": w_fc.T, "bfc": b_fc[None, :],
    }


def reference_forward(x, params):
    """Plain-JAX time-loop reference (same math as torch nn.LSTM + Linear)."""
    S, B, I = x.shape
    H = params["whh1"].shape[0]

    def cell(x_in, h, c, w_ih, w_hh, b):
        g = x_in @ w_ih + h @ w_hh + b
        i = jax.nn.sigmoid(g[:, :H])
        f = jax.nn.sigmoid(g[:, H:2 * H])
        gg = jnp.tanh(g[:, 2 * H:3 * H])
        o = jax.nn.sigmoid(g[:, 3 * H:])
        c = f * c + i * gg
        h = o * jnp.tanh(c)
        return h, c

    h1 = c1 = h2 = c2 = jnp.zeros((B, H), jnp.float32)
    outs = []
    for t in range(S):
        h1, c1 = cell(x[t], h1, c1, params["wih1"], params["whh1"], params["b1"])
        h2, c2 = cell(h1, h2, c2, params["wih2"], params["whh2"], params["b2"])
        outs.append(h2 @ params["wfc"] + params["bfc"])
    return jnp.stack(outs, axis=0)


if __name__ == "__main__":
    seq_len, batch, input_size, hidden_size, output_size = 8, 4, 16, 32, 1

    key = jax.random.PRNGKey(0)
    k_x, k_p = jax.random.split(key)
    x = jax.random.normal(k_x, (seq_len, batch, input_size), jnp.float32)
    params = init_params(k_p, input_size, hidden_size, output_size)
    prepared = prepare_params(params)          # one-time, outside jit

    out = jax.jit(lstm_regression_forward)(x, prepared)
    out = jax.block_until_ready(out)

    ref = reference_forward(x, params)
    assert out.shape == (seq_len, batch, output_size)
    assert jnp.allclose(out, ref, atol=1e-4, rtol=1e-4), "mismatch vs reference"

    print("KERNEL_OK")
</pallas_src>

<mosaic_0001>
module attributes {stable_mosaic.version = 11 : i64} {
  func.func @_lstm_reg_kernel(%arg0: memref<64x16xf32, #tpu.memory_space<vmem>>, %arg1: memref<16x128xf32, #tpu.memory_space<vmem>>, %arg2: memref<1x128xf32, #tpu.memory_space<vmem>>, %arg3: memref<128x256xf32, #tpu.memory_space<vmem>>, %arg4: memref<1x128xf32, #tpu.memory_space<vmem>>, %arg5: memref<128x1xf32, #tpu.memory_space<vmem>>, %arg6: memref<1x1xf32, #tpu.memory_space<vmem>>, %arg7: memref<64x1xf32, #tpu.memory_space<vmem>>, %arg8: memref<64x128xf32, #tpu.memory_space<vmem>>) attributes {dimension_semantics = [], scalar_prefetch = 0 : i64, scratch_operands = 1 : i64, tpu.core_type = #tpu.core_type<tc>} {
    %c0 = arith.constant 0 : index
    %c0_0 = arith.constant 0 : index
    %0 = vector.load %arg0[%c0, %c0_0] : memref<64x16xf32, #tpu.memory_space<vmem>>, vector<64x16xf32>
    %c0_1 = arith.constant 0 : index
    %c0_2 = arith.constant 0 : index
    %1 = vector.load %arg1[%c0_1, %c0_2] : memref<16x128xf32, #tpu.memory_space<vmem>>, vector<16x128xf32>
    %cst = arith.constant dense<0.000000e+00> : vector<64x128xf32>
    %2 = tpu.matmul %0, %1, %cst {dimension_numbers = #tpu.dot_dimension_numbers<[1], [0], [0], [1], [0, 0, 1, 1], [], []>} : vector<64x16xf32>, vector<16x128xf32>, vector<64x128xf32> -> vector<64x128xf32>
    %c0_3 = arith.constant 0 : index
    %c0_4 = arith.constant 0 : index
    %3 = vector.load %arg2[%c0_3, %c0_4] : memref<1x128xf32, #tpu.memory_space<vmem>>, vector<1x128xf32>
    %4 = vector.broadcast %3 : vector<1x128xf32> to vector<64x128xf32>
    %5 = arith.addf %2, %4 : vector<64x128xf32>
    %c0_5 = arith.constant 0 : index
    %c0_6 = arith.constant 0 : index
    %6 = vector.load %arg8[%c0_5, %c0_6] : memref<64x128xf32, #tpu.memory_space<vmem>>, vector<64x128xf32>
    tpu.vector_store %arg8[%c0_5, %c0_6], %5 {strides = array<i32>} : memref<64x128xf32, #tpu.memory_space<vmem>>, vector<64x128xf32>,
    %c0_7 = arith.constant 0 : index
    %c0_8 = arith.constant 0 : index
    %7 = vector.load %arg4[%c0_7, %c0_8] : memref<1x128xf32, #tpu.memory_space<vmem>>, vector<1x128xf32>
    %8 = vector.shape_cast %7 : vector<1x128xf32> to vector<1x128xf32>
    %9 = vector.broadcast %8 : vector<1x128xf32> to vector<8x128xf32>
    %10 = tpu.iota {dimensions = array<i32: 1>} : vector<8x128xi32>
    %c64_i32 = arith.constant 64 : i32
    %11 = vector.broadcast %c64_i32 : i32 to vector<8x128xi32>
    %12 = arith.cmpi sge, %10, %11 : vector<8x128xi32>
    %c96_i32 = arith.constant 96 : i32
    %13 = vector.broadcast %c96_i32 : i32 to vector<8x128xi32>
    %14 = arith.cmpi slt, %10, %13 : vector<8x128xi32>
    %15 = arith.andi %12, %14 : vector<8x128xi1>
    %c32_i32 = arith.constant 32 : i32
    %16 = vector.broadcast %c32_i32 : i32 to vector<8x128xi32>
    %17 = arith.cmpi sge, %10, %16 : vector<8x128xi32>
    %c64_i32_9 = arith.constant 64 : i32
    %18 = vector.broadcast %c64_i32_9 : i32 to vector<8x128xi32>
    %19 = arith.cmpi slt, %10, %18 : vector<8x128xi32>
    %20 = arith.andi %17, %19 : vector<8x128xi1>
    %cst_10 = arith.constant 0.000000e+00 : f32
    %21 = vector.broadcast %cst_10 : f32 to vector<8x128xf32>
    %c0_11 = arith.constant 0 : index
    %c0_12 = arith.constant 0 : index
    %22 = vector.load %arg8[%c0_11, %c0_12] : memref<64x128xf32, #tpu.memory_space<vmem>>, vector<8x128xf32>
    %23 = arith.addf %22, %21 : vector<8x128xf32>
    %cst_13 = arith.constant 5.000000e-01 : f32
    %24 = vector.broadcast %cst_13 : f32 to vector<8x128xf32>
    %25 = arith.mulf %24, %23 : vector<8x128xf32>
    %26 = arith.select %15, %23, %25 : vector<8x128xi1>, vector<8x128xf32>
    %27 = math.tanh %26 : vector<8x128xf32>
    %cst_14 = arith.constant 5.000000e-01 : f32
    %28 = vector.broadcast %cst_14 : f32 to vector<8x128xf32>
    %29 = arith.mulf %28, %27 : vector<8x128xf32>
    %cst_15 = arith.constant 5.000000e-01 : f32
    %30 = vector.broadcast %cst_15 : f32 to vector<8x128xf32>
    %31 = arith.addf %29, %30 : vector<8x128xf32>
    %32 = arith.select %15, %27, %31 : vector<8x128xi1>, vector<8x128xf32>
    %c64_i32_16 = arith.constant 64 : i32
    %33 = tpu.dynamic_rotate %32 by %c64_i32_16 dim 1 : vector<8x128xf32>, i32 -> vector<8x128xf32>
    %34 = arith.mulf %32, %33 : vector<8x128xf32>
    %35 = arith.mulf %32, %21 : vector<8x128xf32>
    %c32_i32_17 = arith.constant 32 : i32
    %36 = tpu.dynamic_rotate %34 by %c32_i32_17 dim 1 : vector<8x128xf32>, i32 -> vector<8x128xf32>
    %37 = arith.addf %35, %36 : vector<8x128xf32>
    %c64_i32_18 = arith.constant 64 : i32
    %38 = tpu.dynamic_rotate %37 by %c64_i32_18 dim 1 : vector<8x128xf32>, i32 -> vector<8x128xf32>
    %39 = math.tanh %38 : vector<8x128xf32>
    %40 = arith.mulf %32, %39 : vector<8x128xf32>
    %c64_i32_19 = arith.constant 64 : i32
    %41 = tpu.dynamic_rotate %21 by %c64_i32_19 dim 1 : vector<8x128xf32>, i32 -> vector<8x128xf32>
    %42 = arith.select %20, %41, %40 : vector<8x128xi1>, vector<8x128xf32>
    %c0_20 = arith.constant 0 : index
    %c0_21 = arith.constant 0 : index
    %43 = vector.load %arg3[%c0_20, %c0_21] : memref<128x256xf32, #tpu.memory_space<vmem>>, vector<128x256xf32>
    %cst_22 = arith.constant dense<0.000000e+00> : vector<8x256xf32>
    %44 = tpu.matmul %42, %43, %cst_22 {dimension_numbers = #tpu.dot_dimension_numbers<[1], [0], [0], [1], [0, 0, 1, 1], [], []>} : vector<8x128xf32>, vector<128x256xf32>, vector<8x256xf32> -> vector<8x256xf32>
    %45 = vector.extract_strided_slice %44 {offsets = [0, 0], sizes = [8, 128], strides = [1, 1]} : vector<8x256xf32> to vector<8x128xf32>
    %46 = arith.addf %45, %9 : vector<8x128xf32>
    %47 = vector.extract_strided_slice %44 {offsets = [0, 128], sizes = [8, 128], strides = [1, 1]} : vector<8x256xf32> to vector<8x128xf32>
    %cst_23 = arith.constant 5.000000e-01 : f32
    %48 = vector.broadcast %cst_23 : f32 to vector<8x128xf32>
    %49 = arith.mulf %48, %46 : vector<8x128xf32>
    %50 = arith.select %15, %46, %49 : vector<8x128xi1>, vector<8x128xf32>
    %51 = math.tanh %50 : vector<8x128xf32>
    %cst_24 = arith.constant 5.000000e-01 : f32
    %52 = vector.broadcast %cst_24 : f32 to vector<8x128xf32>
    %53 = arith.mulf %52, %51 : vector<8x128xf32>
    %cst_25 = arith.constant 5.000000e-01 : f32
    %54 = vector.broadcast %cst_25 : f32 to vector<8x128xf32>
    %55 = arith.addf %53, %54 : vector<8x128xf32>
    %56 = arith.select %15, %51, %55 : vector<8x128xi1>, vector<8x128xf32>
    %c64_i32_26 = arith.constant 64 : i32
    %57 = tpu.dynamic_rotate %56 by %c64_i32_26 dim 1 : vector<8x128xf32>, i32 -> vector<8x128xf32>
    %58 = arith.mulf %56, %57 : vector<8x128xf32>
    %59 = arith.mulf %56, %21 : vector<8x128xf32>
    %c32_i32_27 = arith.constant 32 : i32
    %60 = tpu.dynamic_rotate %58 by %c32_i32_27 dim 1 : vector<8x128xf32>, i32 -> vector<8x128xf32>
    %61 = arith.addf %59, %60 : vector<8x128xf32>
    %c64_i32_28 = arith.constant 64 : i32
    %62 = tpu.dynamic_rotate %61 by %c64_i32_28 dim 1 : vector<8x128xf32>, i32 -> vector<8x128xf32>
    %63 = math.tanh %62 : vector<8x128xf32>
    %64 = arith.mulf %56, %63 : vector<8x128xf32>
    %c0_29 = arith.constant 0 : index
    %c0_30 = arith.constant 0 : index
    %65 = vector.load %arg8[%c0_29, %c0_30] : memref<64x128xf32, #tpu.memory_space<vmem>>, vector<8x128xf32>
    tpu.vector_store %arg8[%c0_29, %c0_30], %64 {strides = array<i32>} : memref<64x128xf32, #tpu.memory_space<vmem>>, vector<8x128xf32>,
    %c8 = arith.constant 8 : index
    %c0_31 = arith.constant 0 : index
    %66 = vector.load %arg8[%c8, %c0_31] : memref<64x128xf32, #tpu.memory_space<vmem>>, vector<8x128xf32>
    %67 = arith.addf %66, %47 : vector<8x128xf32>
    %cst_32 = arith.constant 5.000000e-01 : f32
    %68 = vector.broadcast %cst_32 : f32 to vector<8x128xf32>
    %69 = arith.mulf %68, %67 : vector<8x128xf32>
    %70 = arith.select %15, %67, %69 : vector<8x128xi1>, vector<8x128xf32>
    %71 = math.tanh %70 : vector<8x128xf32>
    %cst_33 = arith.constant 5.000000e-01 : f32
    %72 = vector.broadcast %cst_33 : f32 to vector<8x128xf32>
    %73 = arith.mulf %72, %71 : vector<8x128xf32>
    %cst_34 = arith.constant 5.000000e-01 : f32
    %74 = vector.broadcast %cst_34 : f32 to vector<8x128xf32>
    %75 = arith.addf %73, %74 : vector<8x128xf32>
    %76 = arith.select %15, %71, %75 : vector<8x128xi1>, vector<8x128xf32>
    %c64_i32_35 = arith.constant 64 : i32
    %77 = tpu.dynamic_rotate %76 by %c64_i32_35 dim 1 : vector<8x128xf32>, i32 -> vector<8x128xf32>
    %78 = arith.mulf %76, %77 : vector<8x128xf32>
    %79 = arith.mulf %76, %37 : vector<8x128xf32>
    %c32_i32_36 = arith.constant 32 : i32
    %80 = tpu.dynamic_rotate %78 by %c32_i32_36 dim 1 : vector<8x128xf32>, i32 -> vector<8x128xf32>
    %81 = arith.addf %79, %80 : vector<8x128xf32>
    %c64_i32_37 = arith.constant 64 : i32
    %82 = tpu.dynamic_rotate %81 by %c64_i32_37 dim 1 : vector<8x128xf32>, i32 -> vector<8x128xf32>
    %83 = math.tanh %82 : vector<8x128xf32>
    %84 = arith.mulf %76, %83 : vector<8x128xf32>
    %c64_i32_38 = arith.constant 64 : i32
    %85 = tpu.dynamic_rotate %64 by %c64_i32_38 dim 1 : vector<8x128xf32>, i32 -> vector<8x128xf32>
    %86 = arith.select %20, %85, %84 : vector<8x128xi1>, vector<8x128xf32>
    %c0_39 = arith.constant 0 : index
    %c0_40 = arith.constant 0 : index
    %87 = vector.load %arg3[%c0_39, %c0_40] : memref<128x256xf32, #tpu.memory_space<vmem>>, vector<128x256xf32>
    %cst_41 = arith.constant dense<0.000000e+00> : vector<8x256xf32>
    %88 = tpu.matmul %86, %87, %cst_41 {dimension_numbers = #tpu.dot_dimension_numbers<[1], [0], [0], [1], [0, 0, 1, 1], [], []>} : vector<8x128xf32>, vector<128x256xf32>, vector<8x256xf32> -> vector<8x256xf32>
    %89 = vector.extract_strided_slice %88 {offsets = [0, 0], sizes = [8, 128], strides = [1, 1]} : vector<8x256xf32> to vector<8x128xf32>
    %90 = arith.addf %89, %9 : vector<8x128xf32>
    %91 = vector.extract_strided_slice %88 {offsets = [0, 128], sizes = [8, 128], strides = [1, 1]} : vector<8x256xf32> to vector<8x128xf32>
    %cst_42 = arith.constant 5.000000e-01 : f32
    %92 = vector.broadcast %cst_42 : f32 to vector<8x128xf32>
    %93 = arith.mulf %92, %90 : vector<8x128xf32>
    %94 = arith.select %15, %90, %93 : vector<8x128xi1>, vector<8x128xf32>
    %95 = math.tanh %94 : vector<8x128xf32>
    %cst_43 = arith.constant 5.000000e-01 : f32
    %96 = vector.broadcast %cst_43 : f32 to vector<8x128xf32>
    %97 = arith.mulf %96, %95 : vector<8x128xf32>
    %cst_44 = arith.constant 5.000000e-01 : f32
    %98 = vector.broadcast %cst_44 : f32 to vector<8x128xf32>
    %99 = arith.addf %97, %98 : vector<8x128xf32>
    %100 = arith.select %15, %95, %99 : vector<8x128xi1>, vector<8x128xf32>
    %c64_i32_45 = arith.constant 64 : i32
    %101 = tpu.dynamic_rotate %100 by %c64_i32_45 dim 1 : vector<8x128xf32>, i32 -> vector<8x128xf32>
    %102 = arith.mulf %100, %101 : vector<8x128xf32>
    %103 = arith.mulf %100, %61 : vector<8x128xf32>
    %c32_i32_46 = arith.constant 32 : i32
    %104 = tpu.dynamic_rotate %102 by %c32_i32_46 dim 1 : vector<8x128xf32>, i32 -> vector<8x128xf32>
    %105 = arith.addf %103, %104 : vector<8x128xf32>
    %c64_i32_47 = arith.constant 64 : i32
    %106 = tpu.dynamic_rotate %105 by %c64_i32_47 dim 1 : vector<8x128xf32>, i32 -> vector<8x128xf32>
    %107 = math.tanh %106 : vector<8x128xf32>
    %108 = arith.mulf %100, %107 : vector<8x128xf32>
    %c8_48 = arith.constant 8 : index
    %c0_49 = arith.constant 0 : index
    %109 = vector.load %arg8[%c8_48, %c0_49] : memref<64x128xf32, #tpu.memory_space<vmem>>, vector<8x128xf32>
    tpu.vector_store %arg8[%c8_48, %c0_49], %108 {strides = array<i32>} : memref<64x128xf32, #tpu.memory_space<vmem>>, vector<8x128xf32>,
    %c16 = arith.constant 16 : index
    %c0_50 = arith.constant 0 : index
    %110 = vector.load %arg8[%c16, %c0_50] : memref<64x128xf32, #tpu.memory_space<vmem>>, vector<8x128xf32>
    %111 = arith.addf %110, %91 : vector<8x128xf32>
    %cst_51 = arith.constant 5.000000e-01 : f32
    %112 = vector.broadcast %cst_51 : f32 to vector<8x128xf32>
    %113 = arith.mulf %112, %111 : vector<8x128xf32>
    %114 = arith.select %15, %111, %113 : vector<8x128xi1>, vector<8x128xf32>
    %115 = math.tanh %114 : vector<8x128xf32>
    %cst_52 = arith.constant 5.000000e-01 : f32
    %116 = vector.broadcast %cst_52 : f32 to vector<8x128xf32>
    %117 = arith.mulf %116, %115 : vector<8x128xf32>
    %cst_53 = arith.constant 5.000000e-01 : f32
    %118 = vector.broadcast %cst_53 : f32 to vector<8x128xf32>
    %119 = arith.addf %117, %118 : vector<8x128xf32>
    %120 = arith.select %15, %115, %119 : vector<8x128xi1>, vector<8x128xf32>
    %c64_i32_54 = arith.constant 64 : i32
    %121 = tpu.dynamic_rotate %120 by %c64_i32_54 dim 1 : vector<8x128xf32>, i32 -> vector<8x128xf32>
    %122 = arith.mulf %120, %121 : vector<8x128xf32>
    %123 = arith.mulf %120, %81 : vector<8x128xf32>
    %c32_i32_55 = arith.constant 32 : i32
    %124 = tpu.dynamic_rotate %122 by %c32_i32_55 dim 1 : vector<8x128xf32>, i32 -> vector<8x128xf32>
    %125 = arith.addf %123, %124 : vector<8x128xf32>
    %c64_i32_56 = arith.constant 64 : i32
    %126 = tpu.dynamic_rotate %125 by %c64_i32_56 dim 1 : vector<8x128xf32>, i32 -> vector<8x128xf32>
    %127 = math.tanh %126 : vector<8x128xf32>
    %128 = arith.mulf %120, %127 : vector<8x128xf32>
    %c64_i32_57 = arith.constant 64 : i32
    %129 = tpu.dynamic_rotate %108 by %c64_i32_57 dim 1 : vector<8x128xf32>, i32 -> vector<8x128xf32>
    %130 = arith.select %20, %129, %128 : vector<8x128xi1>, vector<8x128xf32>
    %c0_58 = arith.constant 0 : index
    %c0_59 = arith.constant 0 : index
    %131 = vector.load %arg3[%c0_58, %c0_59] : memref<128x256xf32, #tpu.memory_space<vmem>>, vector<128x256xf32>
    %cst_60 = arith.constant dense<0.000000e+00> : vector<8x256xf32>
    %132 = tpu.matmul %130, %131, %cst_60 {dimension_numbers = #tpu.dot_dimension_numbers<[1], [0], [0], [1], [0, 0, 1, 1], [], []>} : vector<8x128xf32>, vector<128x256xf32>, vector<8x256xf32> -> vector<8x256xf32>
    %133 = vector.extract_strided_slice %132 {offsets = [0, 0], sizes = [8, 128], strides = [1, 1]} : vector<8x256xf32> to vector<8x128xf32>
    %134 = arith.addf %133, %9 : vector<8x128xf32>
    %135 = vector.extract_strided_slice %132 {offsets = [0, 128], sizes = [8, 128], strides = [1, 1]} : vector<8x256xf32> to vector<8x128xf32>
    %cst_61 = arith.constant 5.000000e-01 : f32
    %136 = vector.broadcast %cst_61 : f32 to vector<8x128xf32>
    %137 = arith.mulf %136, %134 : vector<8x128xf32>
    %138 = arith.select %15, %134, %137 : vector<8x128xi1>, vector<8x128xf32>
    %139 = math.tanh %138 : vector<8x128xf32>
    %cst_62 = arith.constant 5.000000e-01 : f32
    %140 = vector.broadcast %cst_62 : f32 to vector<8x128xf32>
    %141 = arith.mulf %140, %139 : vector<8x128xf32>
    %cst_63 = arith.constant 5.000000e-01 : f32
    %142 = vector.broadcast %cst_63 : f32 to vector<8x128xf32>
    %143 = arith.addf %141, %142 : vector<8x128xf32>
    %144 = arith.select %15, %139, %143 : vector<8x128xi1>, vector<8x128xf32>
    %c64_i32_64 = arith.constant 64 : i32
    %145 = tpu.dynamic_rotate %144 by %c64_i32_64 dim 1 : vector<8x128xf32>, i32 -> vector<8x128xf32>
    %146 = arith.mulf %144, %145 : vector<8x128xf32>
    %147 = arith.mulf %144, %105 : vector<8x128xf32>
    %c32_i32_65 = arith.constant 32 : i32
    %148 = tpu.dynamic_rotate %146 by %c32_i32_65 dim 1 : vector<8x128xf32>, i32 -> vector<8x128xf32>
    %149 = arith.addf %147, %148 : vector<8x128xf32>
    %c64_i32_66 = arith.constant 64 : i32
    %150 = tpu.dynamic_rotate %149 by %c64_i32_66 dim 1 : vector<8x128xf32>, i32 -> vector<8x128xf32>
    %151 = math.tanh %150 : vector<8x128xf32>
    %152 = arith.mulf %144, %151 : vector<8x128xf32>
    %c16_67 = arith.constant 16 : index
    %c0_68 = arith.constant 0 : index
    %153 = vector.load %arg8[%c16_67, %c0_68] : memref<64x128xf32, #tpu.memory_space<vmem>>, vector<8x128xf32>
    tpu.vector_store %arg8[%c16_67, %c0_68], %152 {strides = array<i32>} : memref<64x128xf32, #tpu.memory_space<vmem>>, vector<8x128xf32>,
    %c24 = arith.constant 24 : index
    %c0_69 = arith.constant 0 : index
    %154 = vector.load %arg8[%c24, %c0_69] : memref<64x128xf32, #tpu.memory_space<vmem>>, vector<8x128xf32>
    %155 = arith.addf %154, %135 : vector<8x128xf32>
    %cst_70 = arith.constant 5.000000e-01 : f32
    %156 = vector.broadcast %cst_70 : f32 to vector<8x128xf32>
    %157 = arith.mulf %156, %155 : vector<8x128xf32>
    %158 = arith.select %15, %155, %157 : vector<8x128xi1>, vector<8x128xf32>
    %159 = math.tanh %158 : vector<8x128xf32>
    %cst_71 = arith.constant 5.000000e-01 : f32
    %160 = vector.broadcast %cst_71 : f32 to vector<8x128xf32>
    %161 = arith.mulf %160, %159 : vector<8x128xf32>
    %cst_72 = arith.constant 5.000000e-01 : f32
    %162 = vector.broadcast %cst_72 : f32 to vector<8x128xf32>
    %163 = arith.addf %161, %162 : vector<8x128xf32>
    %164 = arith.select %15, %159, %163 : vector<8x128xi1>, vector<8x128xf32>
    %c64_i32_73 = arith.constant 64 : i32
    %165 = tpu.dynamic_rotate %164 by %c64_i32_73 dim 1 : vector<8x128xf32>, i32 -> vector<8x128xf32>
    %166 = arith.mulf %164, %165 : vector<8x128xf32>
    %167 = arith.mulf %164, %125 : vector<8x128xf32>
    %c32_i32_74 = arith.constant 32 : i32
    %168 = tpu.dynamic_rotate %166 by %c32_i32_74 dim 1 : vector<8x128xf32>, i32 -> vector<8x128xf32>
    %169 = arith.addf %167, %168 : vector<8x128xf32>
    %c64_i32_75 = arith.constant 64 : i32
    %170 = tpu.dynamic_rotate %169 by %c64_i32_75 dim 1 : vector<8x128xf32>, i32 -> vector<8x128xf32>
    %171 = math.tanh %170 : vector<8x128xf32>
    %172 = arith.mulf %164, %171 : vector<8x128xf32>
    %c64_i32_76 = arith.constant 64 : i32
    %173 = tpu.dynamic_rotate %152 by %c64_i32_76 dim 1 : vector<8x128xf32>, i32 -> vector<8x128xf32>
    %174 = arith.select %20, %173, %172 : vector<8x128xi1>, vector<8x128xf32>
    %c0_77 = arith.constant 0 : index
    %c0_78 = arith.constant 0 : index
    %175 = vector.load %arg3[%c0_77, %c0_78] : memref<128x256xf32, #tpu.memory_space<vmem>>, vector<128x256xf32>
    %cst_79 = arith.constant dense<0.000000e+00> : vector<8x256xf32>
    %176 = tpu.matmul %174, %175, %cst_79 {dimension_numbers = #tpu.dot_dimension_numbers<[1], [0], [0], [1], [0, 0, 1, 1], [], []>} : vector<8x128xf32>, vector<128x256xf32>, vector<8x256xf32> -> vector<8x256xf32>
    %177 = vector.extract_strided_slice %176 {offsets = [0, 0], sizes = [8, 128], strides = [1, 1]} : vector<8x256xf32> to vector<8x128xf32>
    %178 = arith.addf %177, %9 : vector<8x128xf32>
    %179 = vector.extract_strided_slice %176 {offsets = [0, 128], sizes = [8, 128], strides = [1, 1]} : vector<8x256xf32> to vector<8x128xf32>
    %cst_80 = arith.constant 5.000000e-01 : f32
    %180 = vector.broadcast %cst_80 : f32 to vector<8x128xf32>
    %181 = arith.mulf %180, %178 : vector<8x128xf32>
    %182 = arith.select %15, %178, %181 : vector<8x128xi1>, vector<8x128xf32>
    %183 = math.tanh %182 : vector<8x128xf32>
    %cst_81 = arith.constant 5.000000e-01 : f32
    %184 = vector.broadcast %cst_81 : f32 to vector<8x128xf32>
    %185 = arith.mulf %184, %183 : vector<8x128xf32>
    %cst_82 = arith.constant 5.000000e-01 : f32
    %186 = vector.broadcast %cst_82 : f32 to vector<8x128xf32>
    %187 = arith.addf %185, %186 : vector<8x128xf32>
    %188 = arith.select %15, %183, %187 : vector<8x128xi1>, vector<8x128xf32>
    %c64_i32_83 = arith.constant 64 : i32
    %189 = tpu.dynamic_rotate %188 by %c64_i32_83 dim 1 : vector<8x128xf32>, i32 -> vector<8x128xf32>
    %190 = arith.mulf %188, %189 : vector<8x128xf32>
    %191 = arith.mulf %188, %149 : vector<8x128xf32>
    %c32_i32_84 = arith.constant 32 : i32
    %192 = tpu.dynamic_rotate %190 by %c32_i32_84 dim 1 : vector<8x128xf32>, i32 -> vector<8x128xf32>
    %193 = arith.addf %191, %192 : vector<8x128xf32>
    %c64_i32_85 = arith.constant 64 : i32
    %194 = tpu.dynamic_rotate %193 by %c64_i32_85 dim 1 : vector<8x128xf32>, i32 -> vector<8x128xf32>
    %195 = math.tanh %194 : vector<8x128xf32>
    %196 = arith.mulf %188, %195 : vector<8x128xf32>
    %c24_86 = arith.constant 24 : index
    %c0_87 = arith.constant 0 : index
    %197 = vector.load %arg8[%c24_86, %c0_87] : memref<64x128xf32, #tpu.memory_space<vmem>>, vector<8x128xf32>
    tpu.vector_store %arg8[%c24_86, %c0_87], %196 {strides = array<i32>} : memref<64x128xf32, #tpu.memory_space<vmem>>, vector<8x128xf32>,
    %c32 = arith.constant 32 : index
    %c0_88 = arith.constant 0 : index
    %198 = vector.load %arg8[%c32, %c0_88] : memref<64x128xf32, #tpu.memory_space<vmem>>, vector<8x128xf32>
    %199 = arith.addf %198, %179 : vector<8x128xf32>
    %cst_89 = arith.constant 5.000000e-01 : f32
    %200 = vector.broadcast %cst_89 : f32 to vector<8x128xf32>
    %201 = arith.mulf %200, %199 : vector<8x128xf32>
    %202 = arith.select %15, %199, %201 : vector<8x128xi1>, vector<8x128xf32>
    %203 = math.tanh %202 : vector<8x128xf32>
    %cst_90 = arith.constant 5.000000e-01 : f32
    %204 = vector.broadcast %cst_90 : f32 to vector<8x128xf32>
    %205 = arith.mulf %204, %203 : vector<8x128xf32>
    %cst_91 = arith.constant 5.000000e-01 : f32
    %206 = vector.broadcast %cst_91 : f32 to vector<8x128xf32>
    %207 = arith.addf %205, %206 : vector<8x128xf32>
    %208 = arith.select %15, %203, %207 : vector<8x128xi1>, vector<8x128xf32>
    %c64_i32_92 = arith.constant 64 : i32
    %209 = tpu.dynamic_rotate %208 by %c64_i32_92 dim 1 : vector<8x128xf32>, i32 -> vector<8x128xf32>
    %210 = arith.mulf %208, %209 : vector<8x128xf32>
    %211 = arith.mulf %208, %169 : vector<8x128xf32>
    %c32_i32_93 = arith.constant 32 : i32
    %212 = tpu.dynamic_rotate %210 by %c32_i32_93 dim 1 : vector<8x128xf32>, i32 -> vector<8x128xf32>
    %213 = arith.addf %211, %212 : vector<8x128xf32>
    %c64_i32_94 = arith.constant 64 : i32
    %214 = tpu.dynamic_rotate %213 by %c64_i32_94 dim 1 : vector<8x128xf32>, i32 -> vector<8x128xf32>
    %215 = math.tanh %214 : vector<8x128xf32>
    %216 = arith.mulf %208, %215 : vector<8x128xf32>
    %c64_i32_95 = arith.constant 64 : i32
    %217 = tpu.dynamic_rotate %196 by %c64_i32_95 dim 1 : vector<8x128xf32>, i32 -> vector<8x128xf32>
    %218 = arith.select %20, %217, %216 : vector<8x128xi1>, vector<8x128xf32>
    %c0_96 = arith.constant 0 : index
    %c0_97 = arith.constant 0 : index
    %219 = vector.load %arg3[%c0_96, %c0_97] : memref<128x256xf32, #tpu.memory_space<vmem>>, vector<128x256xf32>
    %cst_98 = arith.constant dense<0.000000e+00> : vector<8x256xf32>
    %220 = tpu.matmul %218, %219, %cst_98 {dimension_numbers = #tpu.dot_dimension_numbers<[1], [0], [0], [1], [0, 0, 1, 1], [], []>} : vector<8x128xf32>, vector<128x256xf32>, vector<8x256xf32> -> vector<8x256xf32>
    %221 = vector.extract_strided_slice %220 {offsets = [0, 0], sizes = [8, 128], strides = [1, 1]} : vector<8x256xf32> to vector<8x128xf32>
    %222 = arith.addf %221, %9 : vector<8x128xf32>
    %223 = vector.extract_strided_slice %220 {offsets = [0, 128], sizes = [8, 128], strides = [1, 1]} : vector<8x256xf32> to vector<8x128xf32>
    %cst_99 = arith.constant 5.000000e-01 : f32
    %224 = vector.broadcast %cst_99 : f32 to vector<8x128xf32>
    %225 = arith.mulf %224, %222 : vector<8x128xf32>
    %226 = arith.select %15, %222, %225 : vector<8x128xi1>, vector<8x128xf32>
    %227 = math.tanh %226 : vector<8x128xf32>
    %cst_100 = arith.constant 5.000000e-01 : f32
    %228 = vector.broadcast %cst_100 : f32 to vector<8x128xf32>
    %229 = arith.mulf %228, %227 : vector<8x128xf32>
    %cst_101 = arith.constant 5.000000e-01 : f32
    %230 = vector.broadcast %cst_101 : f32 to vector<8x128xf32>
    %231 = arith.addf %229, %230 : vector<8x128xf32>
    %232 = arith.select %15, %227, %231 : vector<8x128xi1>, vector<8x128xf32>
    %c64_i32_102 = arith.constant 64 : i32
    %233 = tpu.dynamic_rotate %232 by %c64_i32_102 dim 1 : vector<8x128xf32>, i32 -> vector<8x128xf32>
    %234 = arith.mulf %232, %233 : vector<8x128xf32>
    %235 = arith.mulf %232, %193 : vector<8x128xf32>
    %c32_i32_103 = arith.constant 32 : i32
    %236 = tpu.dynamic_rotate %234 by %c32_i32_103 dim 1 : vector<8x128xf32>, i32 -> vector<8x128xf32>
    %237 = arith.addf %235, %236 : vector<8x128xf32>
    %c64_i32_104 = arith.constant 64 : i32
    %238 = tpu.dynamic_rotate %237 by %c64_i32_104 dim 1 : vector<8x128xf32>, i32 -> vector<8x128xf32>
    %239 = math.tanh %238 : vector<8x128xf32>
    %240 = arith.mulf %232, %239 : vector<8x128xf32>
    %c32_105 = arith.constant 32 : index
    %c0_106 = arith.constant 0 : index
    %241 = vector.load %arg8[%c32_105, %c0_106] : memref<64x128xf32, #tpu.memory_space<vmem>>, vector<8x128xf32>
    tpu.vector_store %arg8[%c32_105, %c0_106], %240 {strides = array<i32>} : memref<64x128xf32, #tpu.memory_space<vmem>>, vector<8x128xf32>,
    %c40 = arith.constant 40 : index
    %c0_107 = arith.constant 0 : index
    %242 = vector.load %arg8[%c40, %c0_107] : memref<64x128xf32, #tpu.memory_space<vmem>>, vector<8x128xf32>
    %243 = arith.addf %242, %223 : vector<8x128xf32>
    %cst_108 = arith.constant 5.000000e-01 : f32
    %244 = vector.broadcast %cst_108 : f32 to vector<8x128xf32>
    %245 = arith.mulf %244, %243 : vector<8x128xf32>
    %246 = arith.select %15, %243, %245 : vector<8x128xi1>, vector<8x128xf32>
    %247 = math.tanh %246 : vector<8x128xf32>
    %cst_109 = arith.constant 5.000000e-01 : f32
    %248 = vector.broadcast %cst_109 : f32 to vector<8x128xf32>
    %249 = arith.mulf %248, %247 : vector<8x128xf32>
    %cst_110 = arith.constant 5.000000e-01 : f32
    %250 = vector.broadcast %cst_110 : f32 to vector<8x128xf32>
    %251 = arith.addf %249, %250 : vector<8x128xf32>
    %252 = arith.select %15, %247, %251 : vector<8x128xi1>, vector<8x128xf32>
    %c64_i32_111 = arith.constant 64 : i32
    %253 = tpu.dynamic_rotate %252 by %c64_i32_111 dim 1 : vector<8x128xf32>, i32 -> vector<8x128xf32>
    %254 = arith.mulf %252, %253 : vector<8x128xf32>
    %255 = arith.mulf %252, %213 : vector<8x128xf32>
    %c32_i32_112 = arith.constant 32 : i32
    %256 = tpu.dynamic_rotate %254 by %c32_i32_112 dim 1 : vector<8x128xf32>, i32 -> vector<8x128xf32>
    %257 = arith.addf %255, %256 : vector<8x128xf32>
    %c64_i32_113 = arith.constant 64 : i32
    %258 = tpu.dynamic_rotate %257 by %c64_i32_113 dim 1 : vector<8x128xf32>, i32 -> vector<8x128xf32>
    %259 = math.tanh %258 : vector<8x128xf32>
    %260 = arith.mulf %252, %259 : vector<8x128xf32>
    %c64_i32_114 = arith.constant 64 : i32
    %261 = tpu.dynamic_rotate %240 by %c64_i32_114 dim 1 : vector<8x128xf32>, i32 -> vector<8x128xf32>
    %262 = arith.select %20, %261, %260 : vector<8x128xi1>, vector<8x128xf32>
    %c0_115 = arith.constant 0 : index
    %c0_116 = arith.constant 0 : index
    %263 = vector.load %arg3[%c0_115, %c0_116] : memref<128x256xf32, #tpu.memory_space<vmem>>, vector<128x256xf32>
    %cst_117 = arith.constant dense<0.000000e+00> : vector<8x256xf32>
    %264 = tpu.matmul %262, %263, %cst_117 {dimension_numbers = #tpu.dot_dimension_numbers<[1], [0], [0], [1], [0, 0, 1, 1], [], []>} : vector<8x128xf32>, vector<128x256xf32>, vector<8x256xf32> -> vector<8x256xf32>
    %265 = vector.extract_strided_slice %264 {offsets = [0, 0], sizes = [8, 128], strides = [1, 1]} : vector<8x256xf32> to vector<8x128xf32>
    %266 = arith.addf %265, %9 : vector<8x128xf32>
    %267 = vector.extract_strided_slice %264 {offsets = [0, 128], sizes = [8, 128], strides = [1, 1]} : vector<8x256xf32> to vector<8x128xf32>
    %cst_118 = arith.constant 5.000000e-01 : f32
    %268 = vector.broadcast %cst_118 : f32 to vector<8x128xf32>
    %269 = arith.mulf %268, %266 : vector<8x128xf32>
    %270 = arith.select %15, %266, %269 : vector<8x128xi1>, vector<8x128xf32>
    %271 = math.tanh %270 : vector<8x128xf32>
    %cst_119 = arith.constant 5.000000e-01 : f32
    %272 = vector.broadcast %cst_119 : f32 to vector<8x128xf32>
    %273 = arith.mulf %272, %271 : vector<8x128xf32>
    %cst_120 = arith.constant 5.000000e-01 : f32
    %274 = vector.broadcast %cst_120 : f32 to vector<8x128xf32>
    %275 = arith.addf %273, %274 : vector<8x128xf32>
    %276 = arith.select %15, %271, %275 : vector<8x128xi1>, vector<8x128xf32>
    %c64_i32_121 = arith.constant 64 : i32
    %277 = tpu.dynamic_rotate %276 by %c64_i32_121 dim 1 : vector<8x128xf32>, i32 -> vector<8x128xf32>
    %278 = arith.mulf %276, %277 : vector<8x128xf32>
    %279 = arith.mulf %276, %237 : vector<8x128xf32>
    %c32_i32_122 = arith.constant 32 : i32
    %280 = tpu.dynamic_rotate %278 by %c32_i32_122 dim 1 : vector<8x128xf32>, i32 -> vector<8x128xf32>
    %281 = arith.addf %279, %280 : vector<8x128xf32>
    %c64_i32_123 = arith.constant 64 : i32
    %282 = tpu.dynamic_rotate %281 by %c64_i32_123 dim 1 : vector<8x128xf32>, i32 -> vector<8x128xf32>
    %283 = math.tanh %282 : vector<8x128xf32>
    %284 = arith.mulf %276, %283 : vector<8x128xf32>
    %c40_124 = arith.constant 40 : index
    %c0_125 = arith.constant 0 : index
    %285 = vector.load %arg8[%c40_124, %c0_125] : memref<64x128xf32, #tpu.memory_space<vmem>>, vector<8x128xf32>
    tpu.vector_store %arg8[%c40_124, %c0_125], %284 {strides = array<i32>} : memref<64x128xf32, #tpu.memory_space<vmem>>, vector<8x128xf32>,
    %c48 = arith.constant 48 : index
    %c0_126 = arith.constant 0 : index
    %286 = vector.load %arg8[%c48, %c0_126] : memref<64x128xf32, #tpu.memory_space<vmem>>, vector<8x128xf32>
    %287 = arith.addf %286, %267 : vector<8x128xf32>
    %cst_127 = arith.constant 5.000000e-01 : f32
    %288 = vector.broadcast %cst_127 : f32 to vector<8x128xf32>
    %289 = arith.mulf %288, %287 : vector<8x128xf32>
    %290 = arith.select %15, %287, %289 : vector<8x128xi1>, vector<8x128xf32>
    %291 = math.tanh %290 : vector<8x128xf32>
    %cst_128 = arith.constant 5.000000e-01 : f32
    %292 = vector.broadcast %cst_128 : f32 to vector<8x128xf32>
    %293 = arith.mulf %292, %291 : vector<8x128xf32>
    %cst_129 = arith.constant 5.000000e-01 : f32
    %294 = vector.broadcast %cst_129 : f32 to vector<8x128xf32>
    %295 = arith.addf %293, %294 : vector<8x128xf32>
    %296 = arith.select %15, %291, %295 : vector<8x128xi1>, vector<8x128xf32>
    %c64_i32_130 = arith.constant 64 : i32
    %297 = tpu.dynamic_rotate %296 by %c64_i32_130 dim 1 : vector<8x128xf32>, i32 -> vector<8x128xf32>
    %298 = arith.mulf %296, %297 : vector<8x128xf32>
    %299 = arith.mulf %296, %257 : vector<8x128xf32>
    %c32_i32_131 = arith.constant 32 : i32
    %300 = tpu.dynamic_rotate %298 by %c32_i32_131 dim 1 : vector<8x128xf32>, i32 -> vector<8x128xf32>
    %301 = arith.addf %299, %300 : vector<8x128xf32>
    %c64_i32_132 = arith.constant 64 : i32
    %302 = tpu.dynamic_rotate %301 by %c64_i32_132 dim 1 : vector<8x128xf32>, i32 -> vector<8x128xf32>
    %303 = math.tanh %302 : vector<8x128xf32>
    %304 = arith.mulf %296, %303 : vector<8x128xf32>
    %c64_i32_133 = arith.constant 64 : i32
    %305 = tpu.dynamic_rotate %284 by %c64_i32_133 dim 1 : vector<8x128xf32>, i32 -> vector<8x128xf32>
    %306 = arith.select %20, %305, %304 : vector<8x128xi1>, vector<8x128xf32>
    %c0_134 = arith.constant 0 : index
    %c0_135 = arith.constant 0 : index
    %307 = vector.load %arg3[%c0_134, %c0_135] : memref<128x256xf32, #tpu.memory_space<vmem>>, vector<128x256xf32>
    %cst_136 = arith.constant dense<0.000000e+00> : vector<8x256xf32>
    %308 = tpu.matmul %306, %307, %cst_136 {dimension_numbers = #tpu.dot_dimension_numbers<[1], [0], [0], [1], [0, 0, 1, 1], [], []>} : vector<8x128xf32>, vector<128x256xf32>, vector<8x256xf32> -> vector<8x256xf32>
    %309 = vector.extract_strided_slice %308 {offsets = [0, 0], sizes = [8, 128], strides = [1, 1]} : vector<8x256xf32> to vector<8x128xf32>
    %310 = arith.addf %309, %9 : vector<8x128xf32>
    %311 = vector.extract_strided_slice %308 {offsets = [0, 128], sizes = [8, 128], strides = [1, 1]} : vector<8x256xf32> to vector<8x128xf32>
    %cst_137 = arith.constant 5.000000e-01 : f32
    %312 = vector.broadcast %cst_137 : f32 to vector<8x128xf32>
    %313 = arith.mulf %312, %310 : vector<8x128xf32>
    %314 = arith.select %15, %310, %313 : vector<8x128xi1>, vector<8x128xf32>
    %315 = math.tanh %314 : vector<8x128xf32>
    %cst_138 = arith.constant 5.000000e-01 : f32
    %316 = vector.broadcast %cst_138 : f32 to vector<8x128xf32>
    %317 = arith.mulf %316, %315 : vector<8x128xf32>
    %cst_139 = arith.constant 5.000000e-01 : f32
    %318 = vector.broadcast %cst_139 : f32 to vector<8x128xf32>
    %319 = arith.addf %317, %318 : vector<8x128xf32>
    %320 = arith.select %15, %315, %319 : vector<8x128xi1>, vector<8x128xf32>
    %c64_i32_140 = arith.constant 64 : i32
    %321 = tpu.dynamic_rotate %320 by %c64_i32_140 dim 1 : vector<8x128xf32>, i32 -> vector<8x128xf32>
    %322 = arith.mulf %320, %321 : vector<8x128xf32>
    %323 = arith.mulf %320, %281 : vector<8x128xf32>
    %c32_i32_141 = arith.constant 32 : i32
    %324 = tpu.dynamic_rotate %322 by %c32_i32_141 dim 1 : vector<8x128xf32>, i32 -> vector<8x128xf32>
    %325 = arith.addf %323, %324 : vector<8x128xf32>
    %c64_i32_142 = arith.constant 64 : i32
    %326 = tpu.dynamic_rotate %325 by %c64_i32_142 dim 1 : vector<8x128xf32>, i32 -> vector<8x128xf32>
    %327 = math.tanh %326 : vector<8x128xf32>
    %328 = arith.mulf %320, %327 : vector<8x128xf32>
    %c48_143 = arith.constant 48 : index
    %c0_144 = arith.constant 0 : index
    %329 = vector.load %arg8[%c48_143, %c0_144] : memref<64x128xf32, #tpu.memory_space<vmem>>, vector<8x128xf32>
    tpu.vector_store %arg8[%c48_143, %c0_144], %328 {strides = array<i32>} : memref<64x128xf32, #tpu.memory_space<vmem>>, vector<8x128xf32>,
    %c56 = arith.constant 56 : index
    %c0_145 = arith.constant 0 : index
    %330 = vector.load %arg8[%c56, %c0_145] : memref<64x128xf32, #tpu.memory_space<vmem>>, vector<8x128xf32>
    %331 = arith.addf %330, %311 : vector<8x128xf32>
    %cst_146 = arith.constant 5.000000e-01 : f32
    %332 = vector.broadcast %cst_146 : f32 to vector<8x128xf32>
    %333 = arith.mulf %332, %331 : vector<8x128xf32>
    %334 = arith.select %15, %331, %333 : vector<8x128xi1>, vector<8x128xf32>
    %335 = math.tanh %334 : vector<8x128xf32>
    %cst_147 = arith.constant 5.000000e-01 : f32
    %336 = vector.broadcast %cst_147 : f32 to vector<8x128xf32>
    %337 = arith.mulf %336, %335 : vector<8x128xf32>
    %cst_148 = arith.constant 5.000000e-01 : f32
    %338 = vector.broadcast %cst_148 : f32 to vector<8x128xf32>
    %339 = arith.addf %337, %338 : vector<8x128xf32>
    %340 = arith.select %15, %335, %339 : vector<8x128xi1>, vector<8x128xf32>
    %c64_i32_149 = arith.constant 64 : i32
    %341 = tpu.dynamic_rotate %340 by %c64_i32_149 dim 1 : vector<8x128xf32>, i32 -> vector<8x128xf32>
    %342 = arith.mulf %340, %341 : vector<8x128xf32>
    %343 = arith.mulf %340, %301 : vector<8x128xf32>
    %c32_i32_150 = arith.constant 32 : i32
    %344 = tpu.dynamic_rotate %342 by %c32_i32_150 dim 1 : vector<8x128xf32>, i32 -> vector<8x128xf32>
    %345 = arith.addf %343, %344 : vector<8x128xf32>
    %c64_i32_151 = arith.constant 64 : i32
    %346 = tpu.dynamic_rotate %345 by %c64_i32_151 dim 1 : vector<8x128xf32>, i32 -> vector<8x128xf32>
    %347 = math.tanh %346 : vector<8x128xf32>
    %348 = arith.mulf %340, %347 : vector<8x128xf32>
    %c64_i32_152 = arith.constant 64 : i32
    %349 = tpu.dynamic_rotate %328 by %c64_i32_152 dim 1 : vector<8x128xf32>, i32 -> vector<8x128xf32>
    %350 = arith.select %20, %349, %348 : vector<8x128xi1>, vector<8x128xf32>
    %c0_153 = arith.constant 0 : index
    %c0_154 = arith.constant 0 : index
    %351 = vector.load %arg3[%c0_153, %c0_154] : memref<128x256xf32, #tpu.memory_space<vmem>>, vector<128x256xf32>
    %cst_155 = arith.constant dense<0.000000e+00> : vector<8x256xf32>
    %352 = tpu.matmul %350, %351, %cst_155 {dimension_numbers = #tpu.dot_dimension_numbers<[1], [0], [0], [1], [0, 0, 1, 1], [], []>} : vector<8x128xf32>, vector<128x256xf32>, vector<8x256xf32> -> vector<8x256xf32>
    %353 = vector.extract_strided_slice %352 {offsets = [0, 0], sizes = [8, 128], strides = [1, 1]} : vector<8x256xf32> to vector<8x128xf32>
    %354 = arith.addf %353, %9 : vector<8x128xf32>
    %cst_156 = arith.constant 5.000000e-01 : f32
    %355 = vector.broadcast %cst_156 : f32 to vector<8x128xf32>
    %356 = arith.mulf %355, %354 : vector<8x128xf32>
    %357 = arith.select %15, %354, %356 : vector<8x128xi1>, vector<8x128xf32>
    %358 = math.tanh %357 : vector<8x128xf32>
    %cst_157 = arith.constant 5.000000e-01 : f32
    %359 = vector.broadcast %cst_157 : f32 to vector<8x128xf32>
    %360 = arith.mulf %359, %358 : vector<8x128xf32>
    %cst_158 = arith.constant 5.000000e-01 : f32
    %361 = vector.broadcast %cst_158 : f32 to vector<8x128xf32>
    %362 = arith.addf %360, %361 : vector<8x128xf32>
    %363 = arith.select %15, %358, %362 : vector<8x128xi1>, vector<8x128xf32>
    %c64_i32_159 = arith.constant 64 : i32
    %364 = tpu.dynamic_rotate %363 by %c64_i32_159 dim 1 : vector<8x128xf32>, i32 -> vector<8x128xf32>
    %365 = arith.mulf %363, %364 : vector<8x128xf32>
    %366 = arith.mulf %363, %325 : vector<8x128xf32>
    %c32_i32_160 = arith.constant 32 : i32
    %367 = tpu.dynamic_rotate %365 by %c32_i32_160 dim 1 : vector<8x128xf32>, i32 -> vector<8x128xf32>
    %368 = arith.addf %366, %367 : vector<8x128xf32>
    %c64_i32_161 = arith.constant 64 : i32
    %369 = tpu.dynamic_rotate %368 by %c64_i32_161 dim 1 : vector<8x128xf32>, i32 -> vector<8x128xf32>
    %370 = math.tanh %369 : vector<8x128xf32>
    %371 = arith.mulf %363, %370 : vector<8x128xf32>
    %c56_162 = arith.constant 56 : index
    %c0_163 = arith.constant 0 : index
    %372 = vector.load %arg8[%c56_162, %c0_163] : memref<64x128xf32, #tpu.memory_space<vmem>>, vector<8x128xf32>
    tpu.vector_store %arg8[%c56_162, %c0_163], %371 {strides = array<i32>} : memref<64x128xf32, #tpu.memory_space<vmem>>, vector<8x128xf32>,
    %c0_164 = arith.constant 0 : index
    %c0_165 = arith.constant 0 : index
    %373 = vector.load %arg8[%c0_164, %c0_165] : memref<64x128xf32, #tpu.memory_space<vmem>>, vector<64x128xf32>
    %c0_166 = arith.constant 0 : index
    %c0_167 = arith.constant 0 : index
    %374 = vector.load %arg5[%c0_166, %c0_167] : memref<128x1xf32, #tpu.memory_space<vmem>>, vector<128x1xf32>
    %cst_168 = arith.constant dense<0.000000e+00> : vector<64x1xf32>
    %375 = tpu.matmul %373, %374, %cst_168 {dimension_numbers = #tpu.dot_dimension_numbers<[1], [0], [0], [1], [0, 0, 1, 1], [], []>} : vector<64x128xf32>, vector<128x1xf32>, vector<64x1xf32> -> vector<64x1xf32>
    %c0_169 = arith.constant 0 : index
    %c0_170 = arith.constant 0 : index
    %376 = vector.load %arg6[%c0_169, %c0_170] : memref<1x1xf32, #tpu.memory_space<vmem>>, vector<1x1xf32>
    %377 = vector.broadcast %376 : vector<1x1xf32> to vector<64x1xf32>
    %378 = arith.addf %375, %377 : vector<64x1xf32>
    %c0_171 = arith.constant 0 : index
    %c0_172 = arith.constant 0 : index
    %379 = vector.load %arg7[%c0_171, %c0_172] : memref<64x1xf32, #tpu.memory_space<vmem>>, vector<64x1xf32>
    tpu.vector_store %arg7[%c0_171, %c0_172], %378 {strides = array<i32>} : memref<64x1xf32, #tpu.memory_space<vmem>>, vector<64x1xf32>,
    return
  }
}

</mosaic_0001>

<llo_original>
// kernel: lstm_regression_forward.1
$region0: #{lstm_regression_forward.1}
  #allocation0 [shape = 'u32[]', space=smem, size = 0x4, offset = 0x4, fixed_abs, tag = 'smem constant byte address 0x4 - core index']
  #allocation1 [shape = 'u32[72,128]{1,0:T(1,128)}', space=vmem, size = 0x9000, scoped, tag = 'internal scratch']
  #allocation2 [shape = 'f32[64,128]{1,0:T(8,128)}', space=vmem, size = 0x8000, scoped, tag = 'scratch operand']
  #allocation3 [shape = 'f32[1,1]{1,0:T(1,128)S(1)}', space=vmem, size = 0x200, scoped, tag = 'scoped memory for lstm_regression_forward.1']
  %s0 = inlined_call_operand.vmem [shape: f32[64,16], index: 0, kind: input, shape index: {}]
  %s1 = inlined_call_operand.vmem [shape: f32[16,128], index: 1, kind: input, shape index: {}]
  %s2 = inlined_call_operand.vmem [shape: f32[1,128], index: 2, kind: input, shape index: {}]
  %s3 = inlined_call_operand.hbm [shape: f32[128,256], index: 3, kind: input, shape index: {}]
  %s4 = inlined_call_operand.vmem [shape: f32[1,128], index: 4, kind: input, shape index: {}]
  %s5 = inlined_call_operand.vmem [shape: f32[128,1], index: 5, kind: input, shape index: {}]
  %s6 = inlined_call_operand.<no memory space> [shape: f32[1,1], index: 6, kind: input, shape index: {}]
  %s7 = inlined_call_operand.vmem [shape: f32[64,1], index: 7, kind: output, shape index: {}]
  %s8 = sld [smem:[#allocation0]]
  $region42: #{lstm_regression_forward.1} parent=0
    _
  %s10 = ssub.s32 1, %s8
  %s11 = scalar_select 0, %s10, %s8
  %v12 = vstv %s6
  %13 = vst [vmem:[#allocation3] sm:$0x1] %v12
  $region1: #{lstm_regression_forward.1} parent=0
    #allocation4 [shape = 'u8[131072]{0}', space=vmem, size = 0x20000, scoped, tag = 'input window, operand 3, single buffered']
    #allocation5 [shape = 's32[1]{0}', space=sflag, size = 0x4, scoped, tag = 'scoped memory for lstm_regression_forward.1']
    %14 = vsyncpa [#allocation5], 0
    // Predicated region
    $region2: #{lstm_regression_forward.1} parent=1 // pred_check
      _
    $region3: #{lstm_regression_forward.1} parent=1 // pred_check_branch
      %16 = sbr.rel (0) target = $region5
    $region4: #{lstm_regression_forward.1} parent=1 // pred_region
      _
    $region5: #{lstm_regression_forward.1} parent=1 // pred_fallthru
      _
    // Predicated region
    $region6: #{lstm_regression_forward.1} parent=1 // pred_check
      _
    $region7: #{lstm_regression_forward.1} parent=1 // pred_check_branch
      %18 = sbr.rel (0) target = $region9
    $region8: #{lstm_regression_forward.1} parent=1 // pred_region
      _
    $region9: #{lstm_regression_forward.1} parent=1 // pred_fallthru
      _
    // Predicated region
    $region10: #{lstm_regression_forward.1} parent=1 // pred_check
      _
    $region11: #{lstm_regression_forward.1} parent=1 // pred_check_branch
      %20 = sbr.rel (0) target = $region13
    $region12: #{lstm_regression_forward.1} parent=1 // pred_region
      _
    $region13: #{lstm_regression_forward.1} parent=1 // pred_fallthru
      _
    // Predicated region
    $region14: #{lstm_regression_forward.1} parent=1 // pred_check
      _
    $region15: #{lstm_regression_forward.1} parent=1 // pred_check_branch
      %22 = sbr.rel (0) target = $region17
    $region16: #{lstm_regression_forward.1} parent=1 // pred_region
      %24 = vsyncadd [#allocation5], 0
      %s25 = sshll.u32 %s3, 4
      %s26 = int_to_ptr.hbm [resolvable:$true] %s25
      %s27 = sshll.u32 [#allocation4], 4
      %s28 = int_to_ptr.vmem [resolvable:$true] %s27
      %33 = dma.hbm_to_vmem [thread:$0]  %s26, 4096, %s28, [#allocation5], 256, 256, 16
    $region17: #{lstm_regression_forward.1} parent=1 // pred_fallthru
      _
    // Predicated region
    $region18: #{lstm_regression_forward.1} parent=1 // pred_check
      _
    $region19: #{lstm_regression_forward.1} parent=1 // pred_check_branch
      %35 = sbr.rel (0) target = $region21
    $region20: #{lstm_regression_forward.1} parent=1 // pred_region
      _
    $region21: #{lstm_regression_forward.1} parent=1 // pred_fallthru
      _
    // Predicated region
    $region22: #{lstm_regression_forward.1} parent=1 // pred_check
      _
    $region23: #{lstm_regression_forward.1} parent=1 // pred_check_branch
      %37 = sbr.rel (0) target = $region25
    $region24: #{lstm_regression_forward.1} parent=1 // pred_region
      _
    $region25: #{lstm_regression_forward.1} parent=1 // pred_fallthru
      _
    // Predicated region
    $region26: #{lstm_regression_forward.1} parent=1 // pred_check
      _
    $region27: #{lstm_regression_forward.1} parent=1 // pred_check_branch
      %39 = sbr.rel (0) target = $region29
    $region28: #{lstm_regression_forward.1} parent=1 // pred_region
      _
    $region29: #{lstm_regression_forward.1} parent=1 // pred_fallthru
      _
    // Predicated region
    $region30: #{lstm_regression_forward.1} parent=1 // pred_check
      _
    $region31: #{lstm_regression_forward.1} parent=1 // pred_check_branch
      %41 = sbr.rel (0) target = $region33
    $region32: #{lstm_regression_forward.1} parent=1 // pred_region
      %43 = dma.done [#allocation5], 4096
    $region33: #{lstm_regression_forward.1} parent=1 // pred_fallthru
      _
    %v44 = vld [vmem:[%s0] sm:$0xff]
    %v45 = vld [vmem:[%s0 + $0x8] sm:$0xff]
    %v46 = vld [vmem:[%s0 + $0x10] sm:$0xff]
    %v47 = vld [vmem:[%s0 + $0x18] sm:$0xff]
    %v48 = vld [vmem:[%s0 + $0x20] sm:$0xff]
    %v49 = vld [vmem:[%s0 + $0x28] sm:$0xff]
    %v50 = vld [vmem:[%s0 + $0x30] sm:$0xff]
    %v51 = vld [vmem:[%s0 + $0x38] sm:$0xff]
    %v52 = vld [vmem:[%s1] sm:$0xff]
    %v53 = vld [vmem:[%s1 + $0x8] sm:$0xff]
    %v54 = vld [vmem:[%s2] sm:$0x1]
    %v56 = vperm.slane %v54, 0
    %vm58 = vcmask 130048
    %v60 = vsel %vm58, %v44, 0
    %v63 = vsel %vm58, %v45, 0
    %v66 = vsel %vm58, %v46, 0
    %v69 = vsel %vm58, %v47, 0
    %v72 = vsel %vm58, %v48, 0
    %v75 = vsel %vm58, %v49, 0
    %v78 = vsel %vm58, %v50, 0
    %v81 = vsel %vm58, %v51, 0
    %83 = vmatpush.msra.mxu0 0.0
    %84 = vmatpush.msra.mxu0 0.0
    %85 = vmatpush.msra.mxu0 0.0
    %86 = vmatpush.msra.mxu0 0.0
    %87 = vmatpush.msra.mxu0 0.0
    %88 = vmatpush.msra.mxu0 0.0
    %89 = vmatpush.msra.mxu0 0.0
    %90 = vmatpush.msra.mxu0 0.0
    %91 = vmatpush.msra.mxu0 0.0
    %92 = vmatpush.msra.mxu0 0.0
    %93 = vmatpush.msra.mxu0 0.0
    %94 = vmatpush.msra.mxu0 0.0
    %95 = vmatpush.msra.mxu0 0.0
    %96 = vmatpush.msra.mxu0 0.0
    %97 = vmatpush.msra.mxu0 %v53
    %98 = vmatpush.msra.mxu0 %v52
    %99 = vmatmul.f32.gmra.mxu0 %v60
    %v100 = vpop.f32.mrf.mxu0
    %v101 = vadd.f32 %v56, %v100
    %102 = vmatmul.f32.gmra.mxu0 %v63
    %v103 = vpop.f32.mrf.mxu0
    %v104 = vadd.f32 %v56, %v103
    %105 = vmatmul.f32.gmra.mxu0 %v66
    %v106 = vpop.f32.mrf.mxu0
    %v107 = vadd.f32 %v56, %v106
    %108 = vmatmul.f32.gmra.mxu0 %v69
    %v109 = vpop.f32.mrf.mxu0
    %v110 = vadd.f32 %v56, %v109
    %111 = vmatmul.f32.gmra.mxu0 %v72
    %v112 = vpop.f32.mrf.mxu0
    %v113 = vadd.f32 %v56, %v112
    %114 = vmatmul.f32.gmra.mxu0 %v75
    %v115 = vpop.f32.mrf.mxu0
    %v116 = vadd.f32 %v56, %v115
    %117 = vmatmul.f32.gmra.mxu0 %v78
    %v118 = vpop.f32.mrf.mxu0
    %v119 = vadd.f32 %v56, %v118
    %120 = vmatmul.f32.gmra.mxu0 %v81
    %v121 = vpop.f32.mrf.mxu0
    %v122 = vadd.f32 %v56, %v121
    %123 = vdwg.mxu0
    %124 = vst [vmem:[#allocation2] sm:$0xff] %v101
    %125 = vst [vmem:[#allocation2 + $0x8] sm:$0xff] %v104
    %126 = vst [vmem:[#allocation2 + $0x10] sm:$0xff] %v107
    %127 = vst [vmem:[#allocation2 + $0x18] sm:$0xff] %v110
    %128 = vst [vmem:[#allocation2 + $0x20] sm:$0xff] %v113
    %129 = vst [vmem:[#allocation2 + $0x28] sm:$0xff] %v116
    %130 = vst [vmem:[#allocation2 + $0x30] sm:$0xff] %v119
    %131 = vst [vmem:[#allocation2 + $0x38] sm:$0xff] %v122
    %v132 = vld [vmem:[%s4] sm:$0x1]
    %v134 = vperm.slane %v132, 0
    %v136 = vlaneseq
    %v137 = vand.u32 %v136, 127
    %vm138 = vcmp.ge.s32.totalorder %v137, 64
    %vm139 = vcmp.lt.s32.totalorder %v137, 96
    %vm140 = vmand %vm138, %vm139
    %vm141 = vcmp.ge.s32.totalorder %v137, 32
    %vm142 = vcmp.lt.s32.totalorder %v137, 64
    %vm143 = vmand %vm141, %vm142
    %v144 = vld [vmem:[#allocation2] sm:$0xff]
    %v145 = vadd.f32 %v144, 0.0
    %v146 = vmul.f32 %v145, 0.5
    %v147 = vsel %vm140, %v145, %v146
    %v148 = vtanh.pop %v147
    %v149 = vmul.f32 %v148, 0.5
    %v150 = vadd.f32 %v149, 0.5
    %v151 = vsel %vm140, %v148, %v150
    %152 = vrot.lane.b32.xlu0 %v151, 64
    %v153 = vpop.permute.xlu0 %152
    %v154 = vmul.f32 %v151, %v153
    %v155 = vmul.f32 %v151, 0.0
    %156 = vrot.lane.b32.xlu0 %v154, 32
    %v157 = vpop.permute.xlu0 %156
    %v158 = vadd.f32 %v155, %v157
    %159 = vrot.lane.b32.xlu0 %v158, 64
    %v160 = vpop.permute.xlu0 %159
    %v161 = vtanh.pop %v160
    %v162 = vmul.f32 %v151, %v161
    %163 = vrot.lane.b32.xlu0 0.0, 64
    %v164 = vpop.permute.xlu0 %163
    %v165 = vsel %vm143, %v164, %v162
    %v166 = vld [vmem:[#allocation4] sm:$0xff]
    %v167 = vld [vmem:[#allocation4 + $0x8] sm:$0xff]
    %v168 = vld [vmem:[#allocation4 + $0x10] sm:$0xff]
    %v169 = vld [vmem:[#allocation4 + $0x18] sm:$0xff]
    %v170 = vld [vmem:[#allocation4 + $0x20] sm:$0xff]
    %v171 = vld [vmem:[#allocation4 + $0x28] sm:$0xff]
    %v172 = vld [vmem:[#allocation4 + $0x30] sm:$0xff]
    %v173 = vld [vmem:[#allocation4 + $0x38] sm:$0xff]
    %v174 = vld [vmem:[#allocation4 + $0x40] sm:$0xff]
    %v175 = vld [vmem:[#allocation4 + $0x48] sm:$0xff]
    %v176 = vld [vmem:[#allocation4 + $0x50] sm:$0xff]
    %v177 = vld [vmem:[#allocation4 + $0x58] sm:$0xff]
    %v178 = vld [vmem:[#allocation4 + $0x60] sm:$0xff]
    %v179 = vld [vmem:[#allocation4 + $0x68] sm:$0xff]
    %v180 = vld [vmem:[#allocation4 + $0x70] sm:$0xff]
    %v181 = vld [vmem:[#allocation4 + $0x78] sm:$0xff]
    %v182 = vld [vmem:[#allocation4 + $0x80] sm:$0xff]
    %v183 = vld [vmem:[#allocation4 + $0x88] sm:$0xff]
    %v184 = vld [vmem:[#allocation4 + $0x90] sm:$0xff]
    %v185 = vld [vmem:[#allocation4 + $0x98] sm:$0xff]
    %v186 = vld [vmem:[#allocation4 + $0xa0] sm:$0xff]
    %v187 = vld [vmem:[#allocation4 + $0xa8] sm:$0xff]
    %v188 = vld [vmem:[#allocation4 + $0xb0] sm:$0xff]
    %v189 = vld [vmem:[#allocation4 + $0xb8] sm:$0xff]
    %v190 = vld [vmem:[#allocation4 + $0xc0] sm:$0xff]
    %v191 = vld [vmem:[#allocation4 + $0xc8] sm:$0xff]
    %v192 = vld [vmem:[#allocation4 + $0xd0] sm:$0xff]
    %v193 = vld [vmem:[#allocation4 + $0xd8] sm:$0xff]
    %v194 = vld [vmem:[#allocation4 + $0xe0] sm:$0xff]
    %v195 = vld [vmem:[#allocation4 + $0xe8] sm:$0xff]
    %v196 = vld [vmem:[#allocation4 + $0xf0] sm:$0xff]
    %v197 = vld [vmem:[#allocation4 + $0xf8] sm:$0xff]
    %198 = vmatpush.msra.mxu0 %v196
    %199 = vmatpush.msra.mxu0 %v194
    %200 = vmatpush.msra.mxu0 %v192
    %201 = vmatpush.msra.mxu0 %v190
    %202 = vmatpush.msra.mxu0 %v188
    %203 = vmatpush.msra.mxu0 %v186
    %204 = vmatpush.msra.mxu0 %v184
    %205 = vmatpush.msra.mxu0 %v182
    %206 = vmatpush.msra.mxu0 %v180
    %207 = vmatpush.msra.mxu0 %v178
    %208 = vmatpush.msra.mxu0 %v176
    %209 = vmatpush.msra.mxu0 %v174
    %210 = vmatpush.msra.mxu0 %v172
    %211 = vmatpush.msra.mxu0 %v170
    %212 = vmatpush.msra.mxu0 %v168
    %213 = vmatpush.msra.mxu0 %v166
    %214 = vmatmul.f32.gmra.mxu0 %v165
    %v215 = vpop.f32.mrf.mxu0
    %v216 = vadd.f32 0.0, %v215
    %217 = vdwg.mxu0
    %218 = vmatpush.msra.mxu0 %v197
    %219 = vmatpush.msra.mxu0 %v195
    %220 = vmatpush.msra.mxu0 %v193
    %221 = vmatpush.msra.mxu0 %v191
    %222 = vmatpush.msra.mxu0 %v189
    %223 = vmatpush.msra.mxu0 %v187
    %224 = vmatpush.msra.mxu0 %v185
    %225 = vmatpush.msra.mxu0 %v183
    %226 = vmatpush.msra.mxu0 %v181
    %227 = vmatpush.msra.mxu0 %v179
    %228 = vmatpush.msra.mxu0 %v177
    %229 = vmatpush.msra.mxu0 %v175
    %230 = vmatpush.msra.mxu0 %v173
    %231 = vmatpush.msra.mxu0 %v171
    %232 = vmatpush.msra.mxu0 %v169
    %233 = vmatpush.msra.mxu0 %v167
    %234 = vmatmul.f32.gmra.mxu0 %v165
    %v235 = vpop.f32.mrf.mxu0
    %v236 = vadd.f32 0.0, %v235
    %237 = vdwg.mxu0
    %v238 = vadd.f32 %v216, %v134
    %v239 = vmul.f32 %v238, 0.5
    %v240 = vsel %vm140, %v238, %v239
    %v241 = vtanh.pop %v240
    %v242 = vmul.f32 %v241, 0.5
    %v243 = vadd.f32 %v242, 0.5
    %v244 = vsel %vm140, %v241, %v243
    %245 = vrot.lane.b32.xlu0 %v244, 64
    %v246 = vpop.permute.xlu0 %245
    %v247 = vmul.f32 %v244, %v246
    %v248 = vmul.f32 %v244, 0.0
    %249 = vrot.lane.b32.xlu0 %v247, 32
    %v250 = vpop.permute.xlu0 %249
    %v251 = vadd.f32 %v248, %v250
    %252 = vrot.lane.b32.xlu0 %v251, 64
    %v253 = vpop.permute.xlu0 %252
    %v254 = vtanh.pop %v253
    %v255 = vmul.f32 %v244, %v254
    %256 = vst [vmem:[#allocation2] sm:$0xff] %v255
    %v257 = vld [vmem:[#allocation2 + $0x8] sm:$0xff]
    %v258 = vadd.f32 %v257, %v236
    %v259 = vmul.f32 %v258, 0.5
    %v260 = vsel %vm140, %v258, %v259
    %v261 = vtanh.pop %v260
    %v262 = vmul.f32 %v261, 0.5
    %v263 = vadd.f32 %v262, 0.5
    %v264 = vsel %vm140, %v261, %v263
    %265 = vrot.lane.b32.xlu0 %v264, 64
    %v266 = vpop.permute.xlu0 %265
    %v267 = vmul.f32 %v264, %v266
    %v268 = vmul.f32 %v264, %v158
    %269 = vrot.lane.b32.xlu0 %v267, 32
    %v270 = vpop.permute.xlu0 %269
    %v271 = vadd.f32 %v268, %v270
    %272 = vrot.lane.b32.xlu0 %v271, 64
    %v273 = vpop.permute.xlu0 %272
    %v274 = vtanh.pop %v273
    %v275 = vmul.f32 %v264, %v274
    %276 = vrot.lane.b32.xlu0 %v255, 64
    %v277 = vpop.permute.xlu0 %276
    %v278 = vsel %vm143, %v277, %v275
    %v279 = vld [vmem:[#allocation4] sm:$0xff]
    %v280 = vld [vmem:[#allocation4 + $0x8] sm:$0xff]
    %v281 = vld [vmem:[#allocation4 + $0x10] sm:$0xff]
    %v282 = vld [vmem:[#allocation4 + $0x18] sm:$0xff]
    %v283 = vld [vmem:[#allocation4 + $0x20] sm:$0xff]
    %v284 = vld [vmem:[#allocation4 + $0x28] sm:$0xff]
    %v285 = vld [vmem:[#allocation4 + $0x30] sm:$0xff]
    %v286 = vld [vmem:[#allocation4 + $0x38] sm:$0xff]
    %v287 = vld [vmem:[#allocation4 + $0x40] sm:$0xff]
    %v288 = vld [vmem:[#allocation4 + $0x48] sm:$0xff]
    %v289 = vld [vmem:[#allocation4 + $0x50] sm:$0xff]
    %v290 = vld [vmem:[#allocation4 + $0x58] sm:$0xff]
    %v291 = vld [vmem:[#allocation4 + $0x60] sm:$0xff]
    %v292 = vld [vmem:[#allocation4 + $0x68] sm:$0xff]
    %v293 = vld [vmem:[#allocation4 + $0x70] sm:$0xff]
    %v294 = vld [vmem:[#allocation4 + $0x78] sm:$0xff]
    %v295 = vld [vmem:[#allocation4 + $0x80] sm:$0xff]
    %v296 = vld [vmem:[#allocation4 + $0x88] sm:$0xff]
    %v297 = vld [vmem:[#allocation4 + $0x90] sm:$0xff]
    %v298 = vld [vmem:[#allocation4 + $0x98] sm:$0xff]
    %v299 = vld [vmem:[#allocation4 + $0xa0] sm:$0xff]
    %v300 = vld [vmem:[#allocation4 + $0xa8] sm:$0xff]
    %v301 = vld [vmem:[#allocation4 + $0xb0] sm:$0xff]
    %v302 = vld [vmem:[#allocation4 + $0xb8] sm:$0xff]
    %v303 = vld [vmem:[#allocation4 + $0xc0] sm:$0xff]
    %v304 = vld [vmem:[#allocation4 + $0xc8] sm:$0xff]
    %v305 = vld [vmem:[#allocation4 + $0xd0] sm:$0xff]
    %v306 = vld [vmem:[#allocation4 + $0xd8] sm:$0xff]
    %v307 = vld [vmem:[#allocation4 + $0xe0] sm:$0xff]
    %v308 = vld [vmem:[#allocation4 + $0xe8] sm:$0xff]
    %v309 = vld [vmem:[#allocation4 + $0xf0] sm:$0xff]
    %v310 = vld [vmem:[#allocation4 + $0xf8] sm:$0xff]
    %311 = vmatpush.msra.mxu0 %v309
    %312 = vmatpush.msra.mxu0 %v307
    %313 = vmatpush.msra.mxu0 %v305
    %314 = vmatpush.msra.mxu0 %v303
    %315 = vmatpush.msra.mxu0 %v301
    %316 = vmatpush.msra.mxu0 %v299
    %317 = vmatpush.msra.mxu0 %v297
    %318 = vmatpush.msra.mxu0 %v295
    %319 = vmatpush.msra.mxu0 %v293
    %320 = vmatpush.msra.mxu0 %v291
    %321 = vmatpush.msra.mxu0 %v289
    %322 = vmatpush.msra.mxu0 %v287
    %323 = vmatpush.msra.mxu0 %v285
    %324 = vmatpush.msra.mxu0 %v283
    %325 = vmatpush.msra.mxu0 %v281
    %326 = vmatpush.msra.mxu0 %v279
    %327 = vmatmul.f32.gmra.mxu0 %v278
    %v328 = vpop.f32.mrf.mxu0
    %v329 = vadd.f32 0.0, %v328
    %330 = vdwg.mxu0
    %331 = vmatpush.msra.mxu0 %v310
    %332 = vmatpush.msra.mxu0 %v308
    %333 = vmatpush.msra.mxu0 %v306
    %334 = vmatpush.msra.mxu0 %v304
    %335 = vmatpush.msra.mxu0 %v302
    %336 = vmatpush.msra.mxu0 %v300
    %337 = vmatpush.msra.mxu0 %v298
    %338 = vmatpush.msra.mxu0 %v296
    %339 = vmatpush.msra.mxu0 %v294
    %340 = vmatpush.msra.mxu0 %v292
    %341 = vmatpush.msra.mxu0 %v290
    %342 = vmatpush.msra.mxu0 %v288
    %343 = vmatpush.msra.mxu0 %v286
    %344 = vmatpush.msra.mxu0 %v284
    %345 = vmatpush.msra.mxu0 %v282
    %346 = vmatpush.msra.mxu0 %v280
    %347 = vmatmul.f32.gmra.mxu0 %v278
    %v348 = vpop.f32.mrf.mxu0
    %v349 = vadd.f32 0.0, %v348
    %350 = vdwg.mxu0
    %v351 = vadd.f32 %v329, %v134
    %v352 = vmul.f32 %v351, 0.5
    %v353 = vsel %vm140, %v351, %v352
    %v354 = vtanh.pop %v353
    %v355 = vmul.f32 %v354, 0.5
    %v356 = vadd.f32 %v355, 0.5
    %v357 = vsel %vm140, %v354, %v356
    %358 = vrot.lane.b32.xlu0 %v357, 64
    %v359 = vpop.permute.xlu0 %358
    %v360 = vmul.f32 %v357, %v359
    %v361 = vmul.f32 %v357, %v251
    %362 = vrot.lane.b32.xlu0 %v360, 32
    %v363 = vpop.permute.xlu0 %362
    %v364 = vadd.f32 %v361, %v363
    %365 = vrot.lane.b32.xlu0 %v364, 64
    %v366 = vpop.permute.xlu0 %365
    %v367 = vtanh.pop %v366
    %v368 = vmul.f32 %v357, %v367
    %369 = vst [vmem:[#allocation2 + $0x8] sm:$0xff] %v368
    %v370 = vld [vmem:[#allocation2 + $0x10] sm:$0xff]
    %v371 = vadd.f32 %v370, %v349
    %v372 = vmul.f32 %v371, 0.5
    %v373 = vsel %vm140, %v371, %v372
    %v374 = vtanh.pop %v373
    %v375 = vmul.f32 %v374, 0.5
    %v376 = vadd.f32 %v375, 0.5
    %v377 = vsel %vm140, %v374, %v376
    %378 = vrot.lane.b32.xlu0 %v377, 64
    %v379 = vpop.permute.xlu0 %378
    %v380 = vmul.f32 %v377, %v379
    %v381 = vmul.f32 %v377, %v271
    %382 = vrot.lane.b32.xlu0 %v380, 32
    %v383 = vpop.permute.xlu0 %382
    %v384 = vadd.f32 %v381, %v383
    %385 = vrot.lane.b32.xlu0 %v384, 64
    %v386 = vpop.permute.xlu0 %385
    %v387 = vtanh.pop %v386
    %v388 = vmul.f32 %v377, %v387
    %389 = vrot.lane.b32.xlu0 %v368, 64
    %v390 = vpop.permute.xlu0 %389
    %v391 = vsel %vm143, %v390, %v388
    %v392 = vld [vmem:[#allocation4] sm:$0xff]
    %v393 = vld [vmem:[#allocation4 + $0x8] sm:$0xff]
    %v394 = vld [vmem:[#allocation4 + $0x10] sm:$0xff]
    %v395 = vld [vmem:[#allocation4 + $0x18] sm:$0xff]
    %v396 = vld [vmem:[#allocation4 + $0x20] sm:$0xff]
    %v397 = vld [vmem:[#allocation4 + $0x28] sm:$0xff]
    %v398 = vld [vmem:[#allocation4 + $0x30] sm:$0xff]
    %v399 = vld [vmem:[#allocation4 + $0x38] sm:$0xff]
    %v400 = vld [vmem:[#allocation4 + $0x40] sm:$0xff]
    %v401 = vld [vmem:[#allocation4 + $0x48] sm:$0xff]
    %v402 = vld [vmem:[#allocation4 + $0x50] sm:$0xff]
    %v403 = vld [vmem:[#allocation4 + $0x58] sm:$0xff]
    %v404 = vld [vmem:[#allocation4 + $0x60] sm:$0xff]
    %v405 = vld [vmem:[#allocation4 + $0x68] sm:$0xff]
    %v406 = vld [vmem:[#allocation4 + $0x70] sm:$0xff]
    %v407 = vld [vmem:[#allocation4 + $0x78] sm:$0xff]
    %v408 = vld [vmem:[#allocation4 + $0x80] sm:$0xff]
    %v409 = vld [vmem:[#allocation4 + $0x88] sm:$0xff]
    %v410 = vld [vmem:[#allocation4 + $0x90] sm:$0xff]
    %v411 = vld [vmem:[#allocation4 + $0x98] sm:$0xff]
    %v412 = vld [vmem:[#allocation4 + $0xa0] sm:$0xff]
    %v413 = vld [vmem:[#allocation4 + $0xa8] sm:$0xff]
    %v414 = vld [vmem:[#allocation4 + $0xb0] sm:$0xff]
    %v415 = vld [vmem:[#allocation4 + $0xb8] sm:$0xff]
    %v416 = vld [vmem:[#allocation4 + $0xc0] sm:$0xff]
    %v417 = vld [vmem:[#allocation4 + $0xc8] sm:$0xff]
    %v418 = vld [vmem:[#allocation4 + $0xd0] sm:$0xff]
    %v419 = vld [vmem:[#allocation4 + $0xd8] sm:$0xff]
    %v420 = vld [vmem:[#allocation4 + $0xe0] sm:$0xff]
    %v421 = vld [vmem:[#allocation4 + $0xe8] sm:$0xff]
    %v422 = vld [vmem:[#allocation4 + $0xf0] sm:$0xff]
    %v423 = vld [vmem:[#allocation4 + $0xf8] sm:$0xff]
    %424 = vmatpush.msra.mxu0 %v422
    %425 = vmatpush.msra.mxu0 %v420
    %426 = vmatpush.msra.mxu0 %v418
    %427 = vmatpush.msra.mxu0 %v416
    %428 = vmatpush.msra.mxu0 %v414
    %429 = vmatpush.msra.mxu0 %v412
    %430 = vmatpush.msra.mxu0 %v410
    %431 = vmatpush.msra.mxu0 %v408
    %432 = vmatpush.msra.mxu0 %v406
    %433 = vmatpush.msra.mxu0 %v404
    %434 = vmatpush.msra.mxu0 %v402
    %435 = vmatpush.msra.mxu0 %v400
    %436 = vmatpush.msra.mxu0 %v398
    %437 = vmatpush.msra.mxu0 %v396
    %438 = vmatpush.msra.mxu0 %v394
    %439 = vmatpush.msra.mxu0 %v392
    %440 = vmatmul.f32.gmra.mxu0 %v391
    %v441 = vpop.f32.mrf.mxu0
    %v442 = vadd.f32 0.0, %v441
    %443 = vdwg.mxu0
    %444 = vmatpush.msra.mxu0 %v423
    %445 = vmatpush.msra.mxu0 %v421
    %446 = vmatpush.msra.mxu0 %v419
    %447 = vmatpush.msra.mxu0 %v417
    %448 = vmatpush.msra.mxu0 %v415
    %449 = vmatpush.msra.mxu0 %v413
    %450 = vmatpush.msra.mxu0 %v411
    %451 = vmatpush.msra.mxu0 %v409
    %452 = vmatpush.msra.mxu0 %v407
    %453 = vmatpush.msra.mxu0 %v405
    %454 = vmatpush.msra.mxu0 %v403
    %455 = vmatpush.msra.mxu0 %v401
    %456 = vmatpush.msra.mxu0 %v399
    %457 = vmatpush.msra.mxu0 %v397
    %458 = vmatpush.msra.mxu0 %v395
    %459 = vmatpush.msra.mxu0 %v393
    %460 = vmatmul.f32.gmra.mxu0 %v391
    %v461 = vpop.f32.mrf.mxu0
    %v462 = vadd.f32 0.0, %v461
    %463 = vdwg.mxu0
    %v464 = vadd.f32 %v442, %v134
    %v465 = vmul.f32 %v464, 0.5
    %v466 = vsel %vm140, %v464, %v465
    %v467 = vtanh.pop %v466
    %v468 = vmul.f32 %v467, 0.5
    %v469 = vadd.f32 %v468, 0.5
    %v470 = vsel %vm140, %v467, %v469
    %471 = vrot.lane.b32.xlu0 %v470, 64
    %v472 = vpop.permute.xlu0 %471
    %v473 = vmul.f32 %v470, %v472
    %v474 = vmul.f32 %v470, %v364
    %475 = vrot.lane.b32.xlu0 %v473, 32
    %v476 = vpop.permute.xlu0 %475
    %v477 = vadd.f32 %v474, %v476
    %478 = vrot.lane.b32.xlu0 %v477, 64
    %v479 = vpop.permute.xlu0 %478
    %v480 = vtanh.pop %v479
    %v481 = vmul.f32 %v470, %v480
    %482 = vst [vmem:[#allocation2 + $0x10] sm:$0xff] %v481
    %v483 = vld [vmem:[#allocation2 + $0x18] sm:$0xff]
    %v484 = vadd.f32 %v483, %v462
    %v485 = vmul.f32 %v484, 0.5
    %v486 = vsel %vm140, %v484, %v485
    %v487 = vtanh.pop %v486
    %v488 = vmul.f32 %v487, 0.5
    %v489 = vadd.f32 %v488, 0.5
    %v490 = vsel %vm140, %v487, %v489
    %491 = vrot.lane.b32.xlu0 %v490, 64
    %v492 = vpop.permute.xlu0 %491
    %v493 = vmul.f32 %v490, %v492
    %v494 = vmul.f32 %v490, %v384
    %495 = vrot.lane.b32.xlu0 %v493, 32
    %v496 = vpop.permute.xlu0 %495
    %v497 = vadd.f32 %v494, %v496
    %498 = vrot.lane.b32.xlu0 %v497, 64
    %v499 = vpop.permute.xlu0 %498
    %v500 = vtanh.pop %v499
    %v501 = vmul.f32 %v490, %v500
    %502 = vrot.lane.b32.xlu0 %v481, 64
    %v503 = vpop.permute.xlu0 %502
    %v504 = vsel %vm143, %v503, %v501
    %v505 = vld [vmem:[#allocation4] sm:$0xff]
    %v506 = vld [vmem:[#allocation4 + $0x8] sm:$0xff]
    %v507 = vld [vmem:[#allocation4 + $0x10] sm:$0xff]
    %v508 = vld [vmem:[#allocation4 + $0x18] sm:$0xff]
    %v509 = vld [vmem:[#allocation4 + $0x20] sm:$0xff]
    %v510 = vld [vmem:[#allocation4 + $0x28] sm:$0xff]
    %v511 = vld [vmem:[#allocation4 + $0x30] sm:$0xff]
    %v512 = vld [vmem:[#allocation4 + $0x38] sm:$0xff]
    %v513 = vld [vmem:[#allocation4 + $0x40] sm:$0xff]
    %v514 = vld [vmem:[#allocation4 + $0x48] sm:$0xff]
    %v515 = vld [vmem:[#allocation4 + $0x50] sm:$0xff]
    %v516 = vld [vmem:[#allocation4 + $0x58] sm:$0xff]
    %v517 = vld [vmem:[#allocation4 + $0x60] sm:$0xff]
    %v518 = vld [vmem:[#allocation4 + $0x68] sm:$0xff]
    %v519 = vld [vmem:[#allocation4 + $0x70] sm:$0xff]
    %v520 = vld [vmem:[#allocation4 + $0x78] sm:$0xff]
    %v521 = vld [vmem:[#allocation4 + $0x80] sm:$0xff]
    %v522 = vld [vmem:[#allocation4 + $0x88] sm:$0xff]
    %v523 = vld [vmem:[#allocation4 + $0x90] sm:$0xff]
    %v524 = vld [vmem:[#allocation4 + $0x98] sm:$0xff]
    %v525 = vld [vmem:[#allocation4 + $0xa0] sm:$0xff]
    %v526 = vld [vmem:[#allocation4 + $0xa8] sm:$0xff]
    %v527 = vld [vmem:[#allocation4 + $0xb0] sm:$0xff]
    %v528 = vld [vmem:[#allocation4 + $0xb8] sm:$0xff]
    %v529 = vld [vmem:[#allocation4 + $0xc0] sm:$0xff]
    %v530 = vld [vmem:[#allocation4 + $0xc8] sm:$0xff]
    %v531 = vld [vmem:[#allocation4 + $0xd0] sm:$0xff]
    %v532 = vld [vmem:[#allocation4 + $0xd8] sm:$0xff]
    %v533 = vld [vmem:[#allocation4 + $0xe0] sm:$0xff]
    %v534 = vld [vmem:[#allocation4 + $0xe8] sm:$0xff]
    %v535 = vld [vmem:[#allocation4 + $0xf0] sm:$0xff]
    %v536 = vld [vmem:[#allocation4 + $0xf8] sm:$0xff]
    %537 = vmatpush.msra.mxu0 %v535
    %538 = vmatpush.msra.mxu0 %v533
    %539 = vmatpush.msra.mxu0 %v531
    %540 = vmatpush.msra.mxu0 %v529
    %541 = vmatpush.msra.mxu0 %v527
    %542 = vmatpush.msra.mxu0 %v525
    %543 = vmatpush.msra.mxu0 %v523
    %544 = vmatpush.msra.mxu0 %v521
    %545 = vmatpush.msra.mxu0 %v519
    %546 = vmatpush.msra.mxu0 %v517
    %547 = vmatpush.msra.mxu0 %v515
    %548 = vmatpush.msra.mxu0 %v513
    %549 = vmatpush.msra.mxu0 %v511
    %550 = vmatpush.msra.mxu0 %v509
    %551 = vmatpush.msra.mxu0 %v507
    %552 = vmatpush.msra.mxu0 %v505
    %553 = vmatmul.f32.gmra.mxu0 %v504
    %v554 = vpop.f32.mrf.mxu0
    %v555 = vadd.f32 0.0, %v554
    %556 = vdwg.mxu0
    %557 = vmatpush.msra.mxu0 %v536
    %558 = vmatpush.msra.mxu0 %v534
    %559 = vmatpush.msra.mxu0 %v532
    %560 = vmatpush.msra.mxu0 %v530
    %561 = vmatpush.msra.mxu0 %v528
    %562 = vmatpush.msra.mxu0 %v526
    %563 = vmatpush.msra.mxu0 %v524
    %564 = vmatpush.msra.mxu0 %v522
    %565 = vmatpush.msra.mxu0 %v520
    %566 = vmatpush.msra.mxu0 %v518
    %567 = vmatpush.msra.mxu0 %v516
    %568 = vmatpush.msra.mxu0 %v514
    %569 = vmatpush.msra.mxu0 %v512
    %570 = vmatpush.msra.mxu0 %v510
    %571 = vmatpush.msra.mxu0 %v508
    %572 = vmatpush.msra.mxu0 %v506
    %573 = vmatmul.f32.gmra.mxu0 %v504
    %v574 = vpop.f32.mrf.mxu0
    %v575 = vadd.f32 0.0, %v574
    %576 = vdwg.mxu0
    %v577 = vadd.f32 %v555, %v134
    %v578 = vmul.f32 %v577, 0.5
    %v579 = vsel %vm140, %v577, %v578
    %v580 = vtanh.pop %v579
    %v581 = vmul.f32 %v580, 0.5
    %v582 = vadd.f32 %v581, 0.5
    %v583 = vsel %vm140, %v580, %v582
    %584 = vrot.lane.b32.xlu0 %v583, 64
    %v585 = vpop.permute.xlu0 %584
    %v586 = vmul.f32 %v583, %v585
    %v587 = vmul.f32 %v583, %v477
    %588 = vrot.lane.b32.xlu0 %v586, 32
    %v589 = vpop.permute.xlu0 %588
    %v590 = vadd.f32 %v587, %v589
    %591 = vrot.lane.b32.xlu0 %v590, 64
    %v592 = vpop.permute.xlu0 %591
    %v593 = vtanh.pop %v592
    %v594 = vmul.f32 %v583, %v593
    %595 = vst [vmem:[#allocation2 + $0x18] sm:$0xff] %v594
    %v596 = vld [vmem:[#allocation2 + $0x20] sm:$0xff]
    %v597 = vadd.f32 %v596, %v575
    %v598 = vmul.f32 %v597, 0.5
    %v599 = vsel %vm140, %v597, %v598
    %v600 = vtanh.pop %v599
    %v601 = vmul.f32 %v600, 0.5
    %v602 = vadd.f32 %v601, 0.5
    %v603 = vsel %vm140, %v600, %v602
    %604 = vrot.lane.b32.xlu0 %v603, 64
    %v605 = vpop.permute.xlu0 %604
    %v606 = vmul.f32 %v603, %v605
    %v607 = vmul.f32 %v603, %v497
    %608 = vrot.lane.b32.xlu0 %v606, 32
    %v609 = vpop.permute.xlu0 %608
    %v610 = vadd.f32 %v607, %v609
    %611 = vrot.lane.b32.xlu0 %v610, 64
    %v612 = vpop.permute.xlu0 %611
    %v613 = vtanh.pop %v612
    %v614 = vmul.f32 %v603, %v613
    %615 = vrot.lane.b32.xlu0 %v594, 64
    %v616 = vpop.permute.xlu0 %615
    %v617 = vsel %vm143, %v616, %v614
    %v618 = vld [vmem:[#allocation4] sm:$0xff]
    %v619 = vld [vmem:[#allocation4 + $0x8] sm:$0xff]
    %v620 = vld [vmem:[#allocation4 + $0x10] sm:$0xff]
    %v621 = vld [vmem:[#allocation4 + $0x18] sm:$0xff]
    %v622 = vld [vmem:[#allocation4 + $0x20] sm:$0xff]
    %v623 = vld [vmem:[#allocation4 + $0x28] sm:$0xff]
    %v624 = vld [vmem:[#allocation4 + $0x30] sm:$0xff]
    %v625 = vld [vmem:[#allocation4 + $0x38] sm:$0xff]
    %v626 = vld [vmem:[#allocation4 + $0x40] sm:$0xff]
    %v627 = vld [vmem:[#allocation4 + $0x48] sm:$0xff]
    %v628 = vld [vmem:[#allocation4 + $0x50] sm:$0xff]
    %v629 = vld [vmem:[#allocation4 + $0x58] sm:$0xff]
    %v630 = vld [vmem:[#allocation4 + $0x60] sm:$0xff]
    %v631 = vld [vmem:[#allocation4 + $0x68] sm:$0xff]
    %v632 = vld [vmem:[#allocation4 + $0x70] sm:$0xff]
    %v633 = vld [vmem:[#allocation4 + $0x78] sm:$0xff]
    %v634 = vld [vmem:[#allocation4 + $0x80] sm:$0xff]
    %v635 = vld [vmem:[#allocation4 + $0x88] sm:$0xff]
    %v636 = vld [vmem:[#allocation4 + $0x90] sm:$0xff]
    %v637 = vld [vmem:[#allocation4 + $0x98] sm:$0xff]
    %v638 = vld [vmem:[#allocation4 + $0xa0] sm:$0xff]
    %v639 = vld [vmem:[#allocation4 + $0xa8] sm:$0xff]
    %v640 = vld [vmem:[#allocation4 + $0xb0] sm:$0xff]
    %v641 = vld [vmem:[#allocation4 + $0xb8] sm:$0xff]
    %v642 = vld [vmem:[#allocation4 + $0xc0] sm:$0xff]
    %v643 = vld [vmem:[#allocation4 + $0xc8] sm:$0xff]
    %v644 = vld [vmem:[#allocation4 + $0xd0] sm:$0xff]
    %v645 = vld [vmem:[#allocation4 + $0xd8] sm:$0xff]
    %v646 = vld [vmem:[#allocation4 + $0xe0] sm:$0xff]
    %v647 = vld [vmem:[#allocation4 + $0xe8] sm:$0xff]
    %v648 = vld [vmem:[#allocation4 + $0xf0] sm:$0xff]
    %v649 = vld [vmem:[#allocation4 + $0xf8] sm:$0xff]
    %650 = vmatpush.msra.mxu0 %v648
    %651 = vmatpush.msra.mxu0 %v646
    %652 = vmatpush.msra.mxu0 %v644
    %653 = vmatpush.msra.mxu0 %v642
    %654 = vmatpush.msra.mxu0 %v640
    %655 = vmatpush.msra.mxu0 %v638
    %656 = vmatpush.msra.mxu0 %v636
    %657 = vmatpush.msra.mxu0 %v634
    %658 = vmatpush.msra.mxu0 %v632
    %659 = vmatpush.msra.mxu0 %v630
    %660 = vmatpush.msra.mxu0 %v628
    %661 = vmatpush.msra.mxu0 %v626
    %662 = vmatpush.msra.mxu0 %v624
    %663 = vmatpush.msra.mxu0 %v622
    %664 = vmatpush.msra.mxu0 %v620
    %665 = vmatpush.msra.mxu0 %v618
    %666 = vmatmul.f32.gmra.mxu0 %v617
    %v667 = vpop.f32.mrf.mxu0
    %v668 = vadd.f32 0.0, %v667
    %669 = vdwg.mxu0
    %670 = vmatpush.msra.mxu0 %v649
    %671 = vmatpush.msra.mxu0 %v647
    %672 = vmatpush.msra.mxu0 %v645
    %673 = vmatpush.msra.mxu0 %v643
    %674 = vmatpush.msra.mxu0 %v641
    %675 = vmatpush.msra.mxu0 %v639
    %676 = vmatpush.msra.mxu0 %v637
    %677 = vmatpush.msra.mxu0 %v635
    %678 = vmatpush.msra.mxu0 %v633
    %679 = vmatpush.msra.mxu0 %v631
    %680 = vmatpush.msra.mxu0 %v629
    %681 = vmatpush.msra.mxu0 %v627
    %682 = vmatpush.msra.mxu0 %v625
    %683 = vmatpush.msra.mxu0 %v623
    %684 = vmatpush.msra.mxu0 %v621
    %685 = vmatpush.msra.mxu0 %v619
    %686 = vmatmul.f32.gmra.mxu0 %v617
    %v687 = vpop.f32.mrf.mxu0
    %v688 = vadd.f32 0.0, %v687
    %689 = vdwg.mxu0
    %v690 = vadd.f32 %v668, %v134
    %v691 = vmul.f32 %v690, 0.5
    %v692 = vsel %vm140, %v690, %v691
    %v693 = vtanh.pop %v692
    %v694 = vmul.f32 %v693, 0.5
    %v695 = vadd.f32 %v694, 0.5
    %v696 = vsel %vm140, %v693, %v695
    %697 = vrot.lane.b32.xlu0 %v696, 64
    %v698 = vpop.permute.xlu0 %697
    %v699 = vmul.f32 %v696, %v698
    %v700 = vmul.f32 %v696, %v590
    %701 = vrot.lane.b32.xlu0 %v699, 32
    %v702 = vpop.permute.xlu0 %701
    %v703 = vadd.f32 %v700, %v702
    %704 = vrot.lane.b32.xlu0 %v703, 64
    %v705 = vpop.permute.xlu0 %704
    %v706 = vtanh.pop %v705
    %v707 = vmul.f32 %v696, %v706
    %708 = vst [vmem:[#allocation2 + $0x20] sm:$0xff] %v707
    %v709 = vld [vmem:[#allocation2 + $0x28] sm:$0xff]
    %v710 = vadd.f32 %v709, %v688
    %v711 = vmul.f32 %v710, 0.5
    %v712 = vsel %vm140, %v710, %v711
    %v713 = vtanh.pop %v712
    %v714 = vmul.f32 %v713, 0.5
    %v715 = vadd.f32 %v714, 0.5
    %v716 = vsel %vm140, %v713, %v715
    %717 = vrot.lane.b32.xlu0 %v716, 64
    %v718 = vpop.permute.xlu0 %717
    %v719 = vmul.f32 %v716, %v718
    %v720 = vmul.f32 %v716, %v610
    %721 = vrot.lane.b32.xlu0 %v719, 32
    %v722 = vpop.permute.xlu0 %721
    %v723 = vadd.f32 %v720, %v722
    %724 = vrot.lane.b32.xlu0 %v723, 64
    %v725 = vpop.permute.xlu0 %724
    %v726 = vtanh.pop %v725
    %v727 = vmul.f32 %v716, %v726
    %728 = vrot.lane.b32.xlu0 %v707, 64
    %v729 = vpop.permute.xlu0 %728
    %v730 = vsel %vm143, %v729, %v727
    %v731 = vld [vmem:[#allocation4] sm:$0xff]
    %v732 = vld [vmem:[#allocation4 + $0x8] sm:$0xff]
    %v733 = vld [vmem:[#allocation4 + $0x10] sm:$0xff]
    %v734 = vld [vmem:[#allocation4 + $0x18] sm:$0xff]
    %v735 = vld [vmem:[#allocation4 + $0x20] sm:$0xff]
    %v736 = vld [vmem:[#allocation4 + $0x28] sm:$0xff]
    %v737 = vld [vmem:[#allocation4 + $0x30] sm:$0xff]
    %v738 = vld [vmem:[#allocation4 + $0x38] sm:$0xff]
    %v739 = vld [vmem:[#allocation4 + $0x40] sm:$0xff]
    %v740 = vld [vmem:[#allocation4 + $0x48] sm:$0xff]
    %v741 = vld [vmem:[#allocation4 + $0x50] sm:$0xff]
    %v742 = vld [vmem:[#allocation4 + $0x58] sm:$0xff]
    %v743 = vld [vmem:[#allocation4 + $0x60] sm:$0xff]
    %v744 = vld [vmem:[#allocation4 + $0x68] sm:$0xff]
    %v745 = vld [vmem:[#allocation4 + $0x70] sm:$0xff]
    %v746 = vld [vmem:[#allocation4 + $0x78] sm:$0xff]
    %v747 = vld [vmem:[#allocation4 + $0x80] sm:$0xff]
    %v748 = vld [vmem:[#allocation4 + $0x88] sm:$0xff]
    %v749 = vld [vmem:[#allocation4 + $0x90] sm:$0xff]
    %v750 = vld [vmem:[#allocation4 + $0x98] sm:$0xff]
    %v751 = vld [vmem:[#allocation4 + $0xa0] sm:$0xff]
    %v752 = vld [vmem:[#allocation4 + $0xa8] sm:$0xff]
    %v753 = vld [vmem:[#allocation4 + $0xb0] sm:$0xff]
    %v754 = vld [vmem:[#allocation4 + $0xb8] sm:$0xff]
    %v755 = vld [vmem:[#allocation4 + $0xc0] sm:$0xff]
    %v756 = vld [vmem:[#allocation4 + $0xc8] sm:$0xff]
    %v757 = vld [vmem:[#allocation4 + $0xd0] sm:$0xff]
    %v758 = vld [vmem:[#allocation4 + $0xd8] sm:$0xff]
    %v759 = vld [vmem:[#allocation4 + $0xe0] sm:$0xff]
    %v760 = vld [vmem:[#allocation4 + $0xe8] sm:$0xff]
    %v761 = vld [vmem:[#allocation4 + $0xf0] sm:$0xff]
    %v762 = vld [vmem:[#allocation4 + $0xf8] sm:$0xff]
    %763 = vmatpush.msra.mxu0 %v761
    %764 = vmatpush.msra.mxu0 %v759
    %765 = vmatpush.msra.mxu0 %v757
    %766 = vmatpush.msra.mxu0 %v755
    %767 = vmatpush.msra.mxu0 %v753
    %768 = vmatpush.msra.mxu0 %v751
    %769 = vmatpush.msra.mxu0 %v749
    %770 = vmatpush.msra.mxu0 %v747
    %771 = vmatpush.msra.mxu0 %v745
    %772 = vmatpush.msra.mxu0 %v743
    %773 = vmatpush.msra.mxu0 %v741
    %774 = vmatpush.msra.mxu0 %v739
    %775 = vmatpush.msra.mxu0 %v737
    %776 = vmatpush.msra.mxu0 %v735
    %777 = vmatpush.msra.mxu0 %v733
    %778 = vmatpush.msra.mxu0 %v731
    %779 = vmatmul.f32.gmra.mxu0 %v730
    %v780 = vpop.f32.mrf.mxu0
    %v781 = vadd.f32 0.0, %v780
    %782 = vdwg.mxu0
    %783 = vmatpush.msra.mxu0 %v762
    %784 = vmatpush.msra.mxu0 %v760
    %785 = vmatpush.msra.mxu0 %v758
    %786 = vmatpush.msra.mxu0 %v756
    %787 = vmatpush.msra.mxu0 %v754
    %788 = vmatpush.msra.mxu0 %v752
    %789 = vmatpush.msra.mxu0 %v750
    %790 = vmatpush.msra.mxu0 %v748
    %791 = vmatpush.msra.mxu0 %v746
    %792 = vmatpush.msra.mxu0 %v744
    %793 = vmatpush.msra.mxu0 %v742
    %794 = vmatpush.msra.mxu0 %v740
    %795 = vmatpush.msra.mxu0 %v738
    %796 = vmatpush.msra.mxu0 %v736
    %797 = vmatpush.msra.mxu0 %v734
    %798 = vmatpush.msra.mxu0 %v732
    %799 = vmatmul.f32.gmra.mxu0 %v730
    %v800 = vpop.f32.mrf.mxu0
    %v801 = vadd.f32 0.0, %v800
    %802 = vdwg.mxu0
    %v803 = vadd.f32 %v781, %v134
    %v804 = vmul.f32 %v803, 0.5
    %v805 = vsel %vm140, %v803, %v804
    %v806 = vtanh.pop %v805
    %v807 = vmul.f32 %v806, 0.5
    %v808 = vadd.f32 %v807, 0.5
    %v809 = vsel %vm140, %v806, %v808
    %810 = vrot.lane.b32.xlu0 %v809, 64
    %v811 = vpop.permute.xlu0 %810
    %v812 = vmul.f32 %v809, %v811
    %v813 = vmul.f32 %v809, %v703
    %814 = vrot.lane.b32.xlu0 %v812, 32
    %v815 = vpop.permute.xlu0 %814
    %v816 = vadd.f32 %v813, %v815
    %817 = vrot.lane.b32.xlu0 %v816, 64
    %v818 = vpop.permute.xlu0 %817
    %v819 = vtanh.pop %v818
    %v820 = vmul.f32 %v809, %v819
    %821 = vst [vmem:[#allocation2 + $0x28] sm:$0xff] %v820
    %v822 = vld [vmem:[#allocation2 + $0x30] sm:$0xff]
    %v823 = vadd.f32 %v822, %v801
    %v824 = vmul.f32 %v823, 0.5
    %v825 = vsel %vm140, %v823, %v824
    %v826 = vtanh.pop %v825
    %v827 = vmul.f32 %v826, 0.5
    %v828 = vadd.f32 %v827, 0.5
    %v829 = vsel %vm140, %v826, %v828
    %830 = vrot.lane.b32.xlu0 %v829, 64
    %v831 = vpop.permute.xlu0 %830
    %v832 = vmul.f32 %v829, %v831
    %v833 = vmul.f32 %v829, %v723
    %834 = vrot.lane.b32.xlu0 %v832, 32
    %v835 = vpop.permute.xlu0 %834
    %v836 = vadd.f32 %v833, %v835
    %837 = vrot.lane.b32.xlu0 %v836, 64
    %v838 = vpop.permute.xlu0 %837
    %v839 = vtanh.pop %v838
    %v840 = vmul.f32 %v829, %v839
    %841 = vrot.lane.b32.xlu0 %v820, 64
    %v842 = vpop.permute.xlu0 %841
    %v843 = vsel %vm143, %v842, %v840
    %v844 = vld [vmem:[#allocation4] sm:$0xff]
    %v845 = vld [vmem:[#allocation4 + $0x8] sm:$0xff]
    %v846 = vld [vmem:[#allocation4 + $0x10] sm:$0xff]
    %v847 = vld [vmem:[#allocation4 + $0x18] sm:$0xff]
    %v848 = vld [vmem:[#allocation4 + $0x20] sm:$0xff]
    %v849 = vld [vmem:[#allocation4 + $0x28] sm:$0xff]
    %v850 = vld [vmem:[#allocation4 + $0x30] sm:$0xff]
    %v851 = vld [vmem:[#allocation4 + $0x38] sm:$0xff]
    %v852 = vld [vmem:[#allocation4 + $0x40] sm:$0xff]
    %v853 = vld [vmem:[#allocation4 + $0x48] sm:$0xff]
    %v854 = vld [vmem:[#allocation4 + $0x50] sm:$0xff]
    %v855 = vld [vmem:[#allocation4 + $0x58] sm:$0xff]
    %v856 = vld [vmem:[#allocation4 + $0x60] sm:$0xff]
    %v857 = vld [vmem:[#allocation4 + $0x68] sm:$0xff]
    %v858 = vld [vmem:[#allocation4 + $0x70] sm:$0xff]
    %v859 = vld [vmem:[#allocation4 + $0x78] sm:$0xff]
    %v860 = vld [vmem:[#allocation4 + $0x80] sm:$0xff]
    %v861 = vld [vmem:[#allocation4 + $0x88] sm:$0xff]
    %v862 = vld [vmem:[#allocation4 + $0x90] sm:$0xff]
    %v863 = vld [vmem:[#allocation4 + $0x98] sm:$0xff]
    %v864 = vld [vmem:[#allocation4 + $0xa0] sm:$0xff]
    %v865 = vld [vmem:[#allocation4 + $0xa8] sm:$0xff]
    %v866 = vld [vmem:[#allocation4 + $0xb0] sm:$0xff]
    %v867 = vld [vmem:[#allocation4 + $0xb8] sm:$0xff]
    %v868 = vld [vmem:[#allocation4 + $0xc0] sm:$0xff]
    %v869 = vld [vmem:[#allocation4 + $0xc8] sm:$0xff]
    %v870 = vld [vmem:[#allocation4 + $0xd0] sm:$0xff]
    %v871 = vld [vmem:[#allocation4 + $0xd8] sm:$0xff]
    %v872 = vld [vmem:[#allocation4 + $0xe0] sm:$0xff]
    %v873 = vld [vmem:[#allocation4 + $0xe8] sm:$0xff]
    %v874 = vld [vmem:[#allocation4 + $0xf0] sm:$0xff]
    %v875 = vld [vmem:[#allocation4 + $0xf8] sm:$0xff]
    %876 = vmatpush.msra.mxu0 %v874
    %877 = vmatpush.msra.mxu0 %v872
    %878 = vmatpush.msra.mxu0 %v870
    %879 = vmatpush.msra.mxu0 %v868
    %880 = vmatpush.msra.mxu0 %v866
    %881 = vmatpush.msra.mxu0 %v864
    %882 = vmatpush.msra.mxu0 %v862
    %883 = vmatpush.msra.mxu0 %v860
    %884 = vmatpush.msra.mxu0 %v858
    %885 = vmatpush.msra.mxu0 %v856
    %886 = vmatpush.msra.mxu0 %v854
    %887 = vmatpush.msra.mxu0 %v852
    %888 = vmatpush.msra.mxu0 %v850
    %889 = vmatpush.msra.mxu0 %v848
    %890 = vmatpush.msra.mxu0 %v846
    %891 = vmatpush.msra.mxu0 %v844
    %892 = vmatmul.f32.gmra.mxu0 %v843
    %v893 = vpop.f32.mrf.mxu0
    %v894 = vadd.f32 0.0, %v893
    %895 = vdwg.mxu0
    %896 = vmatpush.msra.mxu0 %v875
    %897 = vmatpush.msra.mxu0 %v873
    %898 = vmatpush.msra.mxu0 %v871
    %899 = vmatpush.msra.mxu0 %v869
    %900 = vmatpush.msra.mxu0 %v867
    %901 = vmatpush.msra.mxu0 %v865
    %902 = vmatpush.msra.mxu0 %v863
    %903 = vmatpush.msra.mxu0 %v861
    %904 = vmatpush.msra.mxu0 %v859
    %905 = vmatpush.msra.mxu0 %v857
    %906 = vmatpush.msra.mxu0 %v855
    %907 = vmatpush.msra.mxu0 %v853
    %908 = vmatpush.msra.mxu0 %v851
    %909 = vmatpush.msra.mxu0 %v849
    %910 = vmatpush.msra.mxu0 %v847
    %911 = vmatpush.msra.mxu0 %v845
    %912 = vmatmul.f32.gmra.mxu0 %v843
    %v913 = vpop.f32.mrf.mxu0
    %v914 = vadd.f32 0.0, %v913
    %915 = vdwg.mxu0
    %v916 = vadd.f32 %v894, %v134
    %v917 = vmul.f32 %v916, 0.5
    %v918 = vsel %vm140, %v916, %v917
    %v919 = vtanh.pop %v918
    %v920 = vmul.f32 %v919, 0.5
    %v921 = vadd.f32 %v920, 0.5
    %v922 = vsel %vm140, %v919, %v921
    %923 = vrot.lane.b32.xlu0 %v922, 64
    %v924 = vpop.permute.xlu0 %923
    %v925 = vmul.f32 %v922, %v924
    %v926 = vmul.f32 %v922, %v816
    %927 = vrot.lane.b32.xlu0 %v925, 32
    %v928 = vpop.permute.xlu0 %927
    %v929 = vadd.f32 %v926, %v928
    %930 = vrot.lane.b32.xlu0 %v929, 64
    %v931 = vpop.permute.xlu0 %930
    %v932 = vtanh.pop %v931
    %v933 = vmul.f32 %v922, %v932
    %934 = vst [vmem:[#allocation2 + $0x30] sm:$0xff] %v933
    %v935 = vld [vmem:[#allocation2 + $0x38] sm:$0xff]
    %v936 = vadd.f32 %v935, %v914
    %v937 = vmul.f32 %v936, 0.5
    %v938 = vsel %vm140, %v936, %v937
    %v939 = vtanh.pop %v938
    %v940 = vmul.f32 %v939, 0.5
    %v941 = vadd.f32 %v940, 0.5
    %v942 = vsel %vm140, %v939, %v941
    %943 = vrot.lane.b32.xlu0 %v942, 64
    %v944 = vpop.permute.xlu0 %943
    %v945 = vmul.f32 %v942, %v944
    %v946 = vmul.f32 %v942, %v836
    %947 = vrot.lane.b32.xlu0 %v945, 32
    %v948 = vpop.permute.xlu0 %947
    %v949 = vadd.f32 %v946, %v948
    %950 = vrot.lane.b32.xlu0 %v949, 64
    %v951 = vpop.permute.xlu0 %950
    %v952 = vtanh.pop %v951
    %v953 = vmul.f32 %v942, %v952
    %954 = vrot.lane.b32.xlu0 %v933, 64
    %v955 = vpop.permute.xlu0 %954
    %v956 = vsel %vm143, %v955, %v953
    %v957 = vld [vmem:[#allocation4] sm:$0xff]
    %v958 = vld [vmem:[#allocation4 + $0x10] sm:$0xff]
    %v959 = vld [vmem:[#allocation4 + $0x20] sm:$0xff]
    %v960 = vld [vmem:[#allocation4 + $0x30] sm:$0xff]
    %v961 = vld [vmem:[#allocation4 + $0x40] sm:$0xff]
    %v962 = vld [vmem:[#allocation4 + $0x50] sm:$0xff]
    %v963 = vld [vmem:[#allocation4 + $0x60] sm:$0xff]
    %v964 = vld [vmem:[#allocation4 + $0x70] sm:$0xff]
    %v965 = vld [vmem:[#allocation4 + $0x80] sm:$0xff]
    %v966 = vld [vmem:[#allocation4 + $0x90] sm:$0xff]
    %v967 = vld [vmem:[#allocation4 + $0xa0] sm:$0xff]
    %v968 = vld [vmem:[#allocation4 + $0xb0] sm:$0xff]
    %v969 = vld [vmem:[#allocation4 + $0xc0] sm:$0xff]
    %v970 = vld [vmem:[#allocation4 + $0xd0] sm:$0xff]
    %v971 = vld [vmem:[#allocation4 + $0xe0] sm:$0xff]
    %v972 = vld [vmem:[#allocation4 + $0xf0] sm:$0xff]
    %973 = vmatpush.msra.mxu0 %v972
    %974 = vmatpush.msra.mxu0 %v971
    %975 = vmatpush.msra.mxu0 %v970
    %976 = vmatpush.msra.mxu0 %v969
    %977 = vmatpush.msra.mxu0 %v968
    %978 = vmatpush.msra.mxu0 %v967
    %979 = vmatpush.msra.mxu0 %v966
    %980 = vmatpush.msra.mxu0 %v965
    %981 = vmatpush.msra.mxu0 %v964
    %982 = vmatpush.msra.mxu0 %v963
    %983 = vmatpush.msra.mxu0 %v962
    %984 = vmatpush.msra.mxu0 %v961
    %985 = vmatpush.msra.mxu0 %v960
    %986 = vmatpush.msra.mxu0 %v959
    %987 = vmatpush.msra.mxu0 %v958
    %988 = vmatpush.msra.mxu0 %v957
    %989 = vmatmul.f32.gmra.mxu0 %v956
    %v990 = vpop.f32.mrf.mxu0
    %v991 = vadd.f32 0.0, %v990
    %992 = vdwg.mxu0
    %v993 = vadd.f32 %v991, %v134
    %v994 = vmul.f32 %v993, 0.5
    %v995 = vsel %vm140, %v993, %v994
    %v996 = vtanh.pop %v995
    %v997 = vmul.f32 %v996, 0.5
    %v998 = vadd.f32 %v997, 0.5
    %v999 = vsel %vm140, %v996, %v998
    %1000 = vrot.lane.b32.xlu0 %v999, 64
    %v1001 = vpop.permute.xlu0 %1000
    %v1002 = vmul.f32 %v999, %v1001
    %v1003 = vmul.f32 %v999, %v929
    %1004 = vrot.lane.b32.xlu0 %v1002, 32
    %v1005 = vpop.permute.xlu0 %1004
    %v1006 = vadd.f32 %v1003, %v1005
    %1007 = vrot.lane.b32.xlu0 %v1006, 64
    %v1008 = vpop.permute.xlu0 %1007
    %v1009 = vtanh.pop %v1008
    %v1010 = vmul.f32 %v999, %v1009
    %1011 = vst [vmem:[#allocation2 + $0x38] sm:$0xff] %v1010
    %v1012 = vld [vmem:[#allocation2] sm:$0xff]
    %v1013 = vld [vmem:[#allocation2 + $0x8] sm:$0xff]
    %v1014 = vld [vmem:[#allocation2 + $0x10] sm:$0xff]
    %v1015 = vld [vmem:[#allocation2 + $0x18] sm:$0xff]
    %v1016 = vld [vmem:[#allocation2 + $0x20] sm:$0xff]
    %v1017 = vld [vmem:[#allocation2 + $0x28] sm:$0xff]
    %v1018 = vld [vmem:[#allocation2 + $0x30] sm:$0xff]
    %v1019 = vld [vmem:[#allocation2 + $0x38] sm:$0xff]
    %v1020 = vld [vmem:[%s5] sm:$0xff]
    %v1021 = vld [vmem:[%s5 + $0x8] sm:$0xff]
    %v1022 = vld [vmem:[%s5 + $0x10] sm:$0xff]
    %v1023 = vld [vmem:[%s5 + $0x18] sm:$0xff]
    %v1024 = vld [vmem:[%s5 + $0x20] sm:$0xff]
    %v1025 = vld [vmem:[%s5 + $0x28] sm:$0xff]
    %v1026 = vld [vmem:[%s5 + $0x30] sm:$0xff]
    %v1027 = vld [vmem:[%s5 + $0x38] sm:$0xff]
    %v1028 = vld [vmem:[%s5 + $0x40] sm:$0xff]
    %v1029 = vld [vmem:[%s5 + $0x48] sm:$0xff]
    %v1030 = vld [vmem:[%s5 + $0x50] sm:$0xff]
    %v1031 = vld [vmem:[%s5 + $0x58] sm:$0xff]
    %v1032 = vld [vmem:[%s5 + $0x60] sm:$0xff]
    %v1033 = vld [vmem:[%s5 + $0x68] sm:$0xff]
    %v1034 = vld [vmem:[%s5 + $0x70] sm:$0xff]
    %v1035 = vld [vmem:[%s5 + $0x78] sm:$0xff]
    %v1036 = vld [vmem:[#allocation3] sm:$0x1]
    %v1038 = vperm.slane %v1036, 0
    %1040 = vmatpush.msra.mxu0 %v1035
    %1041 = vmatpush.msra.mxu0 %v1034
    %1042 = vmatpush.msra.mxu0 %v1033
    %1043 = vmatpush.msra.mxu0 %v1032
    %1044 = vmatpush.msra.mxu0 %v1031
    %1045 = vmatpush.msra.mxu0 %v1030
    %1046 = vmatpush.msra.mxu0 %v1029
    %1047 = vmatpush.msra.mxu0 %v1028
    %1048 = vmatpush.msra.mxu0 %v1027
    %1049 = vmatpush.msra.mxu0 %v1026
    %1050 = vmatpush.msra.mxu0 %v1025
    %1051 = vmatpush.msra.mxu0 %v1024
    %1052 = vmatpush.msra.mxu0 %v1023
    %1053 = vmatpush.msra.mxu0 %v1022
    %1054 = vmatpush.msra.mxu0 %v1021
    %1055 = vmatpush.msra.mxu0 %v1020
    %1056 = vmatmul.f32.gmra.mxu0 %v1012
    %v1057 = vpop.f32.mrf.mxu0
    %v1058 = vadd.f32 %v1038, %v1057
    %1059 = vmatmul.f32.gmra.mxu0 %v1013
    %v1060 = vpop.f32.mrf.mxu0
    %v1061 = vadd.f32 %v1038, %v1060
    %1062 = vmatmul.f32.gmra.mxu0 %v1014
    %v1063 = vpop.f32.mrf.mxu0
    %v1064 = vadd.f32 %v1038, %v1063
    %1065 = vmatmul.f32.gmra.mxu0 %v1015
    %v1066 = vpop.f32.mrf.mxu0
    %v1067 = vadd.f32 %v1038, %v1066
    %1068 = vmatmul.f32.gmra.mxu0 %v1016
    %v1069 = vpop.f32.mrf.mxu0
    %v1070 = vadd.f32 %v1038, %v1069
    %1071 = vmatmul.f32.gmra.mxu0 %v1017
    %v1072 = vpop.f32.mrf.mxu0
    %v1073 = vadd.f32 %v1038, %v1072
    %1074 = vmatmul.f32.gmra.mxu0 %v1018
    %v1075 = vpop.f32.mrf.mxu0
    %v1076 = vadd.f32 %v1038, %v1075
    %1077 = vmatmul.f32.gmra.mxu0 %v1019
    %v1078 = vpop.f32.mrf.mxu0
    %v1079 = vadd.f32 %v1038, %v1078
    %1080 = vdwg.mxu0
    %vm1081 = vcmask 7168
    %1082 = vst.msk [vmem:[%s7] sm:$0xff] %vm1081, %v1058
    %1083 = vst.msk [vmem:[%s7 + $0x8] sm:$0xff] %vm1081, %v1061
    %1084 = vst.msk [vmem:[%s7 + $0x10] sm:$0xff] %vm1081, %v1064
    %1085 = vst.msk [vmem:[%s7 + $0x18] sm:$0xff] %vm1081, %v1067
    %1086 = vst.msk [vmem:[%s7 + $0x20] sm:$0xff] %vm1081, %v1070
    %1087 = vst.msk [vmem:[%s7 + $0x28] sm:$0xff] %vm1081, %v1073
    %1088 = vst.msk [vmem:[%s7 + $0x30] sm:$0xff] %vm1081, %v1076
    %1089 = vst.msk [vmem:[%s7 + $0x38] sm:$0xff] %vm1081, %v1079
    // Predicated region
    $region34: #{lstm_regression_forward.1} parent=1 // pred_check
      _
    $region35: #{lstm_regression_forward.1} parent=1 // pred_check_branch
      %1091 = sbr.rel (0) target = $region37
    $region36: #{lstm_regression_forward.1} parent=1 // pred_region
      _
    $region37: #{lstm_regression_forward.1} parent=1 // pred_fallthru
      _
    // Predicated region
    $region38: #{lstm_regression_forward.1} parent=1 // pred_check
      _
    $region39: #{lstm_regression_forward.1} parent=1 // pred_check_branch
      %1093 = sbr.rel (0) target = $region41
    $region40: #{lstm_regression_forward.1} parent=1 // pred_region
      _
    $region41: #{lstm_regression_forward.1} parent=1 // pred_fallthru
      _
    %1094 = vsyncpa [#allocation5], 1

</llo_original>
